<compile_context>
chip_gen: v6e
topology: v6e:2x2x1
jax: 0.10.0
libtpu: 0.0.40
codegen_flags: <defaults>
</compile_context>

<pallas_src>
import jax
import jax.numpy as jnp
from jax.experimental import pallas as pl
from jax.experimental.pallas import tpu as pltpu

DIM = 4  # `dim` of the PyTorch module for the toy run

# For ConvTranspose2d(k=4, s=2, p=1):  oh + 1 = 2*ih + kh
#   oh even (oh=2m):   kh=1 @ ih=m   , kh=3 @ ih=m-1
#   oh odd  (oh=2m+1): kh=0 @ ih=m+1 , kh=2 @ ih=m
# (identical relations hold for ow / kw / iw)
_TAPS = ((1, 3), (0, 2))     # output parity -> contributing kernel offsets
_SHIFTS = ((0, -1), (1, 0))  # output parity -> input shift for each tap above


def upsample_kernel(x_ref, w_ref, b_ref, out_ref, xpad_ref):
    # x_ref:    (1, H, W, C)   bf16  channels-last input block (one sample)
    # w_ref:    (4, 4C, C)     bf16  per-parity tap-fused weights
    # b_ref:    (1, 4C)        f32   bias tiled once per parity
    # out_ref:  (1, H*W, 4C)   f32   one lane-contiguous slab per sample
    # xpad_ref: (H+2, W+2, C)  f32   VMEM scratch: zero-padded input
    _, h, w, c = x_ref.shape

    # Fold the zero halo into the kernel: no wrapper-side jnp.pad / HBM pass.
    xpad_ref[...] = jnp.zeros_like(xpad_ref)
    xpad_ref[1:h + 1, 1:w + 1, :] = x_ref[0].astype(xpad_ref.dtype)

    # The 9 unique shifted views (was 16): load / reshape / cast each once.
    shifted = {}
    for dh in (-1, 0, 1):
        for dw in (-1, 0, 1):
            xt = xpad_ref[1 + dh:1 + dh + h, 1 + dw:1 + dw + w, :]
            shifted[(dh, dw)] = xt.reshape(h * w, c).astype(jnp.bfloat16)

    # One fused K=4C MXU dot per output parity, f32 accumulation.
    ys = []
    for pi, (ph, pw) in enumerate(((0, 0), (0, 1), (1, 0), (1, 1))):
        x_cat = jnp.concatenate(
            [shifted[(dh, dw)] for dh in _SHIFTS[ph] for dw in _SHIFTS[pw]],
            axis=-1)                                      # (H*W, 4C)
        ys.append(jnp.dot(x_cat, w_ref[pi],
                          preferred_element_type=jnp.float32))

    # Single bias add + single wide store per sample (f32 epilogue).
    y = jnp.concatenate(ys, axis=-1) + b_ref[...]         # (H*W, 4C)
    out_ref[0] = y.astype(out_ref.dtype)


def _pack_weights(weight):
    """(C_in, C_out, 4, 4) ConvTranspose2d weight -> (4, 4*C_in, C_out):
    per output parity, the 4 contributing channel-mixing matrices stacked
    along the contraction axis, in the exact tap order the kernel uses when
    concatenating the shifted inputs (row taps outer, col taps inner)."""
    blocks = []
    for ph in (0, 1):
        for pw in (0, 1):
            taps = [weight[:, :, kh, kw]
                    for kh in _TAPS[ph] for kw in _TAPS[pw]]
            blocks.append(jnp.concatenate(taps, axis=0))   # (4C_in, C_out)
    return jnp.stack(blocks, axis=0)                        # (4, 4C_in, C_out)


def upsample_forward(x, weight, bias):
    """x: (N, C, H, W) f32 (PyTorch layout); weight: (C, C, 4, 4); bias: (C,).
    Returns (N, C, 2H, 2W) f32."""
    n, c, h, w = x.shape
    # bf16 at the DMA boundary (halves HBM->VMEM bytes, bf16 MXU rate).
    x_cl = jnp.transpose(x, (0, 2, 3, 1)).astype(jnp.bfloat16)   # (N, H, W, C)
    w_pk = _pack_weights(weight).astype(jnp.bfloat16)            # (4, 4C, C)
    b4 = jnp.tile(bias.astype(jnp.float32), 4).reshape(1, 4 * c)  # (1, 4C)

    out = pl.pallas_call(
        upsample_kernel,
        out_shape=jax.ShapeDtypeStruct((n, h * w, 4 * c), jnp.float32),
        grid=(n,),
        in_specs=[
            pl.BlockSpec((1, h, w, c), lambda i: (i, 0, 0, 0)),
            pl.BlockSpec((4, 4 * c, c), lambda i: (0, 0, 0)),
            pl.BlockSpec((1, 4 * c), lambda i: (0, 0)),
        ],
        out_specs=pl.BlockSpec((1, h * w, 4 * c), lambda i: (i, 0, 0)),
        scratch_shapes=[pltpu.VMEM((h + 2, w + 2, c), jnp.float32)],
        compiler_params=pltpu.CompilerParams(
            dimension_semantics=("parallel",),
            vmem_limit_bytes=32 * 1024 * 1024),
    )(x_cl, w_pk, b4)

    # (N, H*W, [parity|C]) -> (N, C, 2H, 2W).  Single XLA layout pass; a
    # channels-last / parity-major consumer could skip it entirely.
    out = out.reshape(n, h, w, 2, 2, c)                  # (n, h, w, ph, pw, c)
    out = jnp.transpose(out, (0, 5, 1, 3, 2, 4))         # (n, c, h, ph, w, pw)
    return out.reshape(n, c, 2 * h, 2 * w)


def reference_forward(x, weight, bias):
    """Pure-JAX brute-force ConvTranspose2d(k=4, s=2, p=1), PyTorch semantics."""
    n, ci, h, w = x.shape
    co = weight.shape[1]
    out = jnp.zeros((n, co, 2 * h + 3, 2 * w + 3), jnp.float32)
    for kh in range(4):
        for kw in range(4):
            contrib = jnp.einsum('nihw,io->nohw', x, weight[:, :, kh, kw])
            # oh = 2*ih + kh (before removing padding=1)
            out = out.at[:, :, kh:kh + 2 * h:2, kw:kw + 2 * w:2].add(contrib)
    out = out[:, :, 1:2 * h + 1, 1:2 * w + 1]
    return out + bias[None, :, None, None]


if __name__ == "__main__":
    key = jax.random.PRNGKey(0)
    wkey, bkey, xkey = jax.random.split(key, 3)

    n, c, h, w = 2, DIM, 16, 16
    k = 1.0 / (c * 4 * 4) ** 0.5  # PyTorch ConvTranspose2d default init range
    weight = jax.random.uniform(wkey, (c, c, 4, 4), jnp.float32, -k, k)
    bias = jax.random.uniform(bkey, (c,), jnp.float32, -k, k)
    x = jax.random.normal(xkey, (n, c, h, w), jnp.float32)

    y = upsample_forward(x, weight, bias)
    y = jax.block_until_ready(y)

    ref = reference_forward(x, weight, bias)
    assert y.shape == (n, c, 2 * h, 2 * w)
    # Tolerance covers the intentional bf16 DMA/MXU path (f32 accumulation)
    # vs. the default-precision f32 XLA reference; any real indexing or
    # weight-packing bug would produce O(0.1)+ errors.
    err = float(jnp.max(jnp.abs(y - ref)))
    assert jnp.allclose(y, ref, atol=3e-2, rtol=3e-2), \
        f"mismatch vs reference, max abs err {err}"

    print("KERNEL_OK")
</pallas_src>

<mosaic_0001>
module attributes {stable_mosaic.version = 11 : i64} {
  func.func @upsample_kernel(%arg0: i32, %arg1: memref<1x16x16x4xbf16, #tpu.memory_space<vmem>>, %arg2: memref<4x16x4xbf16, #tpu.memory_space<vmem>>, %arg3: memref<1x16xf32, #tpu.memory_space<vmem>>, %arg4: memref<1x256x16xf32, #tpu.memory_space<vmem>>, %arg5: memref<18x18x4xf32, #tpu.memory_space<vmem>>) attributes {dimension_semantics = [#tpu.dimension_semantics<parallel>], iteration_bounds = array<i64: 2>, scalar_prefetch = 0 : i64, scratch_operands = 1 : i64, tpu.core_type = #tpu.core_type<tc>, window_params = [{transform_indices = @transform_0, window_bounds = array<i64: 1, 16, 16, 4>}, {pipeline_mode = #tpu.pipeline_mode<synchronous>, transform_indices = @transform_1, window_bounds = array<i64: 4, 16, 4>}, {pipeline_mode = #tpu.pipeline_mode<synchronous>, transform_indices = @transform_2, window_bounds = array<i64: 1, 16>}, {transform_indices = @transform_3, window_bounds = array<i64: 1, 256, 16>}]} {
    %cst = arith.constant 0.000000e+00 : f32
    %0 = vector.broadcast %cst : f32 to vector<18x18x4xf32>
    %c0 = arith.constant 0 : index
    %c0_0 = arith.constant 0 : index
    %c0_1 = arith.constant 0 : index
    %1 = vector.load %arg5[%c0, %c0_0, %c0_1] : memref<18x18x4xf32, #tpu.memory_space<vmem>>, vector<18x18x4xf32>
    tpu.vector_store %arg5[%c0, %c0_0, %c0_1], %0 {strides = array<i32>} : memref<18x18x4xf32, #tpu.memory_space<vmem>>, vector<18x18x4xf32>,
    %c0_2 = arith.constant 0 : index
    %c0_3 = arith.constant 0 : index
    %c0_4 = arith.constant 0 : index
    %c0_5 = arith.constant 0 : index
    %2 = vector.load %arg1[%c0_2, %c0_3, %c0_4, %c0_5] : memref<1x16x16x4xbf16, #tpu.memory_space<vmem>>, vector<1x16x16x4xbf16>
    %3 = vector.shape_cast %2 : vector<1x16x16x4xbf16> to vector<16x16x4xbf16>
    %4 = arith.extf %3 : vector<16x16x4xbf16> to vector<16x16x4xf32>
    %c1 = arith.constant 1 : index
    %c1_6 = arith.constant 1 : index
    %c0_7 = arith.constant 0 : index
    %5 = vector.load %arg5[%c1, %c1_6, %c0_7] : memref<18x18x4xf32, #tpu.memory_space<vmem>>, vector<16x16x4xf32>
    tpu.vector_store %arg5[%c1, %c1_6, %c0_7], %4 {strides = array<i32>} : memref<18x18x4xf32, #tpu.memory_space<vmem>>, vector<16x16x4xf32>,
    %c0_8 = arith.constant 0 : index
    %c0_9 = arith.constant 0 : index
    %c0_10 = arith.constant 0 : index
    %6 = vector.load %arg5[%c0_8, %c0_9, %c0_10] : memref<18x18x4xf32, #tpu.memory_space<vmem>>, vector<16x16x4xf32>
    %7 = vector.shape_cast %6 : vector<16x16x4xf32> to vector<256x4xf32>
    %8 = arith.truncf %7 : vector<256x4xf32> to vector<256x4xbf16>
    %c0_11 = arith.constant 0 : index
    %c1_12 = arith.constant 1 : index
    %c0_13 = arith.constant 0 : index
    %9 = vector.load %arg5[%c0_11, %c1_12, %c0_13] : memref<18x18x4xf32, #tpu.memory_space<vmem>>, vector<16x16x4xf32>
    %10 = vector.shape_cast %9 : vector<16x16x4xf32> to vector<256x4xf32>
    %11 = arith.truncf %10 : vector<256x4xf32> to vector<256x4xbf16>
    %c0_14 = arith.constant 0 : index
    %c2 = arith.constant 2 : index
    %c0_15 = arith.constant 0 : index
    %12 = vector.load %arg5[%c0_14, %c2, %c0_15] : memref<18x18x4xf32, #tpu.memory_space<vmem>>, vector<16x16x4xf32>
    %13 = vector.shape_cast %12 : vector<16x16x4xf32> to vector<256x4xf32>
    %14 = arith.truncf %13 : vector<256x4xf32> to vector<256x4xbf16>
    %c1_16 = arith.constant 1 : index
    %c0_17 = arith.constant 0 : index
    %c0_18 = arith.constant 0 : index
    %15 = vector.load %arg5[%c1_16, %c0_17, %c0_18] : memref<18x18x4xf32, #tpu.memory_space<vmem>>, vector<16x16x4xf32>
    %16 = vector.shape_cast %15 : vector<16x16x4xf32> to vector<256x4xf32>
    %17 = arith.truncf %16 : vector<256x4xf32> to vector<256x4xbf16>
    %c1_19 = arith.constant 1 : index
    %c1_20 = arith.constant 1 : index
    %c0_21 = arith.constant 0 : index
    %18 = vector.load %arg5[%c1_19, %c1_20, %c0_21] : memref<18x18x4xf32, #tpu.memory_space<vmem>>, vector<16x16x4xf32>
    %19 = vector.shape_cast %18 : vector<16x16x4xf32> to vector<256x4xf32>
    %20 = arith.truncf %19 : vector<256x4xf32> to vector<256x4xbf16>
    %c1_22 = arith.constant 1 : index
    %c2_23 = arith.constant 2 : index
    %c0_24 = arith.constant 0 : index
    %21 = vector.load %arg5[%c1_22, %c2_23, %c0_24] : memref<18x18x4xf32, #tpu.memory_space<vmem>>, vector<16x16x4xf32>
    %22 = vector.shape_cast %21 : vector<16x16x4xf32> to vector<256x4xf32>
    %23 = arith.truncf %22 : vector<256x4xf32> to vector<256x4xbf16>
    %c2_25 = arith.constant 2 : index
    %c0_26 = arith.constant 0 : index
    %c0_27 = arith.constant 0 : index
    %24 = vector.load %arg5[%c2_25, %c0_26, %c0_27] : memref<18x18x4xf32, #tpu.memory_space<vmem>>, vector<16x16x4xf32>
    %25 = vector.shape_cast %24 : vector<16x16x4xf32> to vector<256x4xf32>
    %26 = arith.truncf %25 : vector<256x4xf32> to vector<256x4xbf16>
    %c2_28 = arith.constant 2 : index
    %c1_29 = arith.constant 1 : index
    %c0_30 = arith.constant 0 : index
    %27 = vector.load %arg5[%c2_28, %c1_29, %c0_30] : memref<18x18x4xf32, #tpu.memory_space<vmem>>, vector<16x16x4xf32>
    %28 = vector.shape_cast %27 : vector<16x16x4xf32> to vector<256x4xf32>
    %29 = arith.truncf %28 : vector<256x4xf32> to vector<256x4xbf16>
    %c2_31 = arith.constant 2 : index
    %c2_32 = arith.constant 2 : index
    %c0_33 = arith.constant 0 : index
    %30 = vector.load %arg5[%c2_31, %c2_32, %c0_33] : memref<18x18x4xf32, #tpu.memory_space<vmem>>, vector<16x16x4xf32>
    %31 = vector.shape_cast %30 : vector<16x16x4xf32> to vector<256x4xf32>
    %32 = arith.truncf %31 : vector<256x4xf32> to vector<256x4xbf16>
    %33 = tpu.concatenate %20, %17, %11, %8 in 1 : vector<256x4xbf16>, vector<256x4xbf16>, vector<256x4xbf16>, vector<256x4xbf16> -> vector<256x16xbf16>
    %c0_34 = arith.constant 0 : index
    %c0_35 = arith.constant 0 : index
    %c0_36 = arith.constant 0 : index
    %34 = vector.load %arg2[%c0_34, %c0_35, %c0_36] : memref<4x16x4xbf16, #tpu.memory_space<vmem>>, vector<1x16x4xbf16>
    %35 = vector.shape_cast %34 : vector<1x16x4xbf16> to vector<16x4xbf16>
    %cst_37 = arith.constant dense<0.000000e+00> : vector<256x4xf32>
    %36 = tpu.matmul %33, %35, %cst_37 {dimension_numbers = #tpu.dot_dimension_numbers<[1], [0], [0], [1], [0, 0, 1, 1], [], []>} : vector<256x16xbf16>, vector<16x4xbf16>, vector<256x4xf32> -> vector<256x4xf32>
    %37 = tpu.concatenate %23, %20, %14, %11 in 1 : vector<256x4xbf16>, vector<256x4xbf16>, vector<256x4xbf16>, vector<256x4xbf16> -> vector<256x16xbf16>
    %c1_38 = arith.constant 1 : index
    %c0_39 = arith.constant 0 : index
    %c0_40 = arith.constant 0 : index
    %38 = vector.load %arg2[%c1_38, %c0_39, %c0_40] : memref<4x16x4xbf16, #tpu.memory_space<vmem>>, vector<1x16x4xbf16>
    %39 = vector.shape_cast %38 : vector<1x16x4xbf16> to vector<16x4xbf16>
    %cst_41 = arith.constant dense<0.000000e+00> : vector<256x4xf32>
    %40 = tpu.matmul %37, %39, %cst_41 {dimension_numbers = #tpu.dot_dimension_numbers<[1], [0], [0], [1], [0, 0, 1, 1], [], []>} : vector<256x16xbf16>, vector<16x4xbf16>, vector<256x4xf32> -> vector<256x4xf32>
    %41 = tpu.concatenate %29, %26, %20, %17 in 1 : vector<256x4xbf16>, vector<256x4xbf16>, vector<256x4xbf16>, vector<256x4xbf16> -> vector<256x16xbf16>
    %c2_42 = arith.constant 2 : index
    %c0_43 = arith.constant 0 : index
    %c0_44 = arith.constant 0 : index
    %42 = vector.load %arg2[%c2_42, %c0_43, %c0_44] : memref<4x16x4xbf16, #tpu.memory_space<vmem>>, vector<1x16x4xbf16>
    %43 = vector.shape_cast %42 : vector<1x16x4xbf16> to vector<16x4xbf16>
    %cst_45 = arith.constant dense<0.000000e+00> : vector<256x4xf32>
    %44 = tpu.matmul %41, %43, %cst_45 {dimension_numbers = #tpu.dot_dimension_numbers<[1], [0], [0], [1], [0, 0, 1, 1], [], []>} : vector<256x16xbf16>, vector<16x4xbf16>, vector<256x4xf32> -> vector<256x4xf32>
    %45 = tpu.concatenate %32, %29, %23, %20 in 1 : vector<256x4xbf16>, vector<256x4xbf16>, vector<256x4xbf16>, vector<256x4xbf16> -> vector<256x16xbf16>
    %c3 = arith.constant 3 : index
    %c0_46 = arith.constant 0 : index
    %c0_47 = arith.constant 0 : index
    %46 = vector.load %arg2[%c3, %c0_46, %c0_47] : memref<4x16x4xbf16, #tpu.memory_space<vmem>>, vector<1x16x4xbf16>
    %47 = vector.shape_cast %46 : vector<1x16x4xbf16> to vector<16x4xbf16>
    %cst_48 = arith.constant dense<0.000000e+00> : vector<256x4xf32>
    %48 = tpu.matmul %45, %47, %cst_48 {dimension_numbers = #tpu.dot_dimension_numbers<[1], [0], [0], [1], [0, 0, 1, 1], [], []>} : vector<256x16xbf16>, vector<16x4xbf16>, vector<256x4xf32> -> vector<256x4xf32>
    %49 = tpu.concatenate %36, %40, %44, %48 in 1 : vector<256x4xf32>, vector<256x4xf32>, vector<256x4xf32>, vector<256x4xf32> -> vector<256x16xf32>
    %c0_49 = arith.constant 0 : index
    %c0_50 = arith.constant 0 : index
    %50 = vector.load %arg3[%c0_49, %c0_50] : memref<1x16xf32, #tpu.memory_space<vmem>>, vector<1x16xf32>
    %51 = vector.broadcast %50 : vector<1x16xf32> to vector<256x16xf32>
    %52 = arith.addf %49, %51 : vector<256x16xf32>
    %c0_51 = arith.constant 0 : index
    %c0_52 = arith.constant 0 : index
    %c0_53 = arith.constant 0 : index
    %53 = vector.load %arg4[%c0_51, %c0_52, %c0_53] : memref<1x256x16xf32, #tpu.memory_space<vmem>>, vector<1x256x16xf32>
    %54 = vector.shape_cast %53 : vector<1x256x16xf32> to vector<256x16xf32>
    %55 = vector.shape_cast %52 : vector<256x16xf32> to vector<1x256x16xf32>
    tpu.vector_store %arg4[%c0_51, %c0_52, %c0_53], %55 {strides = array<i32>} : memref<1x256x16xf32, #tpu.memory_space<vmem>>, vector<1x256x16xf32>,
    return
  }
  func.func @transform_0(%arg0: i32) -> (i32, i32, i32, i32) {
    %c0_i32 = arith.constant 0 : i32
    %c0_i32_0 = arith.constant 0 : i32
    %c0_i32_1 = arith.constant 0 : i32
    %c0_i32_2 = arith.constant 0 : i32
    return %arg0, %c0_i32, %c0_i32_0, %c0_i32_1 : i32, i32, i32, i32
  }
  func.func @transform_1(%arg0: i32) -> (i32, i32, i32) {
    %c0_i32 = arith.constant 0 : i32
    %c0_i32_0 = arith.constant 0 : i32
    %c0_i32_1 = arith.constant 0 : i32
    %c0_i32_2 = arith.constant 0 : i32
    return %c0_i32, %c0_i32_0, %c0_i32_1 : i32, i32, i32
  }
  func.func @transform_2(%arg0: i32) -> (i32, i32) {
    %c0_i32 = arith.constant 0 : i32
    %c0_i32_0 = arith.constant 0 : i32
    %c0_i32_1 = arith.constant 0 : i32
    return %c0_i32, %c0_i32_0 : i32, i32
  }
  func.func @transform_3(%arg0: i32) -> (i32, i32, i32) {
    %c0_i32 = arith.constant 0 : i32
    %c0_i32_0 = arith.constant 0 : i32
    %c0_i32_1 = arith.constant 0 : i32
    return %arg0, %c0_i32, %c0_i32_0 : i32, i32, i32
  }
}

</mosaic_0001>

<llo_original>
// kernel: tpu_custom_call.1
$region0: #{tpu_custom_call.1}
  #allocation0 [shape = 'u32[]', space=smem, size = 0x4, offset = 0x4, fixed_abs, tag = 'smem constant byte address 0x4 - core index']
  #allocation1 [shape = 'u32[144,128]{1,0:T(1,128)}', space=vmem, size = 0x12000, scoped, tag = 'internal scratch']
  #allocation2 [shape = 'f32[18,18,4]{2,1,0:T(8,128)}', space=vmem, size = 0x36000, scoped, tag = 'scratch operand']
  %s0 = inlined_call_operand.vmem [shape: bf16[2,16,16,4], index: 0, kind: input, shape index: {}]
  %s1 = inlined_call_operand.vmem [shape: bf16[4,16,4], index: 1, kind: input, shape index: {}]
  %s2 = inlined_call_operand.vmem [shape: f32[1,16], index: 2, kind: input, shape index: {}]
  %s3 = inlined_call_operand.vmem [shape: f32[2,256,16], index: 3, kind: output, shape index: {}]
  %s4 = sld [smem:[#allocation0]]
  $region45: #{tpu_custom_call.1} parent=0
    _
  %s6 = ssub.s32 1, %s4
  %s7 = scalar_select 0, %s6, %s4
  loop: start=0, step=1, limit=4
  $region2: #{tpu_custom_call.1} parent=0 // loop_pre_header
    _
  $region3: #{tpu_custom_call.1} parent=0 // loop_header
    %s9 = sphi 0, %s13
    %p10 = scmp.ge.s32.totalorder %s9, 4
    %s19 = sphi 0, %s21
    %s22 = sphi 0, %s19
    %s23 = sphi 0, %s22
    %s39 = sphi 0, %s23
    %s43 = sphi 0, %s43
    %s45 = sphi 0, %s43
    %s46 = sphi 0, %s45
    %s60 = sphi 0, %s46
    %s64 = sphi 0, %s64
    %s66 = sphi 0, %s64
    %s67 = sphi 0, %s66
    %s81 = sphi 0, %s67
    %s87 = sphi 0, %s89
    %s90 = sphi 0, %s87
    %s91 = sphi 0, %s90
    %s107 = sphi 0, %s91
  $region4: #{tpu_custom_call.1} parent=0 // loop_header_branch
    %12 = sbr.rel (%p10) target = $region8
  $region5: #{tpu_custom_call.1} parent=0 // loop_body
    %s14 = ssub.s32 %s9, 1
    %s15 = ssub.s32 %s9, 2
    %s16 = sadd.s32 %s9, 1
    %s17 = ssub.s32 %s9, %s16
    %p18 = scmp.eq.s32.totalorder %s17, 0
    %s20 = sadd.s32 %s19, 1
    %s21 = scalar_select %p18, %s19, %s20
    %p24 = pneg %p18
    %p25 = scmp.eq.s32.totalorder %s9, 1
    %p26 = por %p24, %p25
    %p27 = scmp.ne.s32.totalorder %s19, %s22
    %p28 = scmp.eq.s32.totalorder %s9, 0
    %p29 = por %p27, %p28
    %p30 = scmp.ne.s32.totalorder %s19, %s22
    %p31 = scmp.eq.s32.totalorder %s14, 1
    %p32 = por %p30, %p31
    %p33 = scmp.ne.s32.totalorder %s22, %s23
    %p34 = scmp.eq.s32.totalorder %s14, 0
    %p35 = por %p33, %p34
    %p36 = scmp.ne.s32.totalorder %s22, %s23
    %p37 = scmp.eq.s32.totalorder %s15, 1
    %p38 = por %p36, %p37
    %p40 = scmp.ne.s32.totalorder %s23, %s39
    %p41 = scmp.eq.s32.totalorder %s15, 0
    %p42 = por %p40, %p41
    %s44 = sadd.s32 %s43, 1
    %p47 = scmp.eq.s32.totalorder %s9, 1
    %p48 = scmp.ne.s32.totalorder %s43, %s45
    %p49 = scmp.eq.s32.totalorder %s9, 0
    %p50 = por %p48, %p49
    %p51 = scmp.ne.s32.totalorder %s43, %s45
    %p52 = scmp.eq.s32.totalorder %s14, 1
    %p53 = por %p51, %p52
    %p54 = scmp.ne.s32.totalorder %s45, %s46
    %p55 = scmp.eq.s32.totalorder %s14, 0
    %p56 = por %p54, %p55
    %p57 = scmp.ne.s32.totalorder %s45, %s46
    %p58 = scmp.eq.s32.totalorder %s15, 1
    %p59 = por %p57, %p58
    %p61 = scmp.ne.s32.totalorder %s46, %s60
    %p62 = scmp.eq.s32.totalorder %s15, 0
    %p63 = por %p61, %p62
    %s65 = sadd.s32 %s64, 1
    %p68 = scmp.eq.s32.totalorder %s9, 1
    %p69 = scmp.ne.s32.totalorder %s64, %s66
    %p70 = scmp.eq.s32.totalorder %s9, 0
    %p71 = por %p69, %p70
    %p72 = scmp.ne.s32.totalorder %s64, %s66
    %p73 = scmp.eq.s32.totalorder %s14, 1
    %p74 = por %p72, %p73
    %p75 = scmp.ne.s32.totalorder %s66, %s67
    %p76 = scmp.eq.s32.totalorder %s14, 0
    %p77 = por %p75, %p76
    %p78 = scmp.ne.s32.totalorder %s66, %s67
    %p79 = scmp.eq.s32.totalorder %s15, 1
    %p80 = por %p78, %p79
    %p82 = scmp.ne.s32.totalorder %s67, %s81
    %p83 = scmp.eq.s32.totalorder %s15, 0
    %p84 = por %p82, %p83
    %s85 = ssub.s32 %s9, %s16
    %p86 = scmp.eq.s32.totalorder %s85, 0
    %s88 = sadd.s32 %s87, 1
    %s89 = scalar_select %p86, %s87, %s88
    %p92 = pneg %p86
    %p93 = scmp.eq.s32.totalorder %s9, 1
    %p94 = por %p92, %p93
    %p95 = scmp.ne.s32.totalorder %s87, %s90
    %p96 = scmp.eq.s32.totalorder %s9, 0
    %p97 = por %p95, %p96
    %p98 = scmp.ne.s32.totalorder %s87, %s90
    %p99 = scmp.eq.s32.totalorder %s14, 1
    %p100 = por %p98, %p99
    %p101 = scmp.ne.s32.totalorder %s90, %s91
    %p102 = scmp.eq.s32.totalorder %s14, 0
    %p103 = por %p101, %p102
    %p104 = scmp.ne.s32.totalorder %s90, %s91
    %p105 = scmp.eq.s32.totalorder %s15, 1
    %p106 = por %p104, %p105
    %p108 = scmp.ne.s32.totalorder %s91, %s107
    %p109 = scmp.eq.s32.totalorder %s15, 0
    %p110 = por %p108, %p109
    %p111 = scmp.le.s32.totalorder 1, %s9
    %p112 = scmp.lt.s32.totalorder %s9, 3
    %p113 = pnand %p111, %p112
    %p114 = pneg %p113
    // Predicated region
    $region9: #{tpu_custom_call.1} parent=5 // pred_check
      _
    $region10: #{tpu_custom_call.1} parent=5 // pred_check_branch
      %116 = sbr.rel (%p113) target = $region12
    $region11: #{tpu_custom_call.1} parent=5 // pred_region
      %s117 = ssub.s32 %s9, 1
      // Predicated region
      $region13: #{tpu_custom_call.1} parent=11 // pred_check
        %p118 = pneg %p56
      $region14: #{tpu_custom_call.1} parent=11 // pred_check_branch
        %120 = sbr.rel (%p118) target = $region16
      $region15: #{tpu_custom_call.1} parent=11 // pred_region
        _
      $region16: #{tpu_custom_call.1} parent=11 // pred_fallthru
        _
      // Predicated region
      $region17: #{tpu_custom_call.1} parent=11 // pred_check
        %p121 = pneg %p77
      $region18: #{tpu_custom_call.1} parent=11 // pred_check_branch
        %123 = sbr.rel (%p121) target = $region20
      $region19: #{tpu_custom_call.1} parent=11 // pred_region
        _
      $region20: #{tpu_custom_call.1} parent=11 // pred_fallthru
        _
    $region12: #{tpu_custom_call.1} parent=5 // pred_fallthru
      _
    %p124 = scmp.lt.s32.totalorder %s9, 2
    // Predicated region
    $region21: #{tpu_custom_call.1} parent=5 // pred_check
      %p125 = pneg %p124
    $region22: #{tpu_custom_call.1} parent=5 // pred_check_branch
      %127 = sbr.rel (%p125) target = $region24
    $region23: #{tpu_custom_call.1} parent=5 // pred_region
      // Predicated region
      $region25: #{tpu_custom_call.1} parent=23 // pred_check
        %p128 = pneg %p29
      $region26: #{tpu_custom_call.1} parent=23 // pred_check_branch
        %130 = sbr.rel (%p128) target = $region28
      $region27: #{tpu_custom_call.1} parent=23 // pred_region
        %p131 = scmp.lt.s32.totalorder %s9, 1
        %s132 = scalar_select %p131, %s9, 1
        %s133 = smul.addr %s132, 32
        %s134 = smul.addr %s133, 4
        %s135 = scalar_lea.vmem %s0, %s134
      $region28: #{tpu_custom_call.1} parent=23 // pred_fallthru
        _
    $region24: #{tpu_custom_call.1} parent=5 // pred_fallthru
      _
    %p136 = scmp.le.s32.totalorder 1, %s9
    %p137 = scmp.lt.s32.totalorder %s9, 3
    %p138 = pnand %p136, %p137
    %p139 = pneg %p138
    // Predicated region
    $region29: #{tpu_custom_call.1} parent=5 // pred_check
      _
    $region30: #{tpu_custom_call.1} parent=5 // pred_check_branch
      %141 = sbr.rel (%p138) target = $region32
    $region31: #{tpu_custom_call.1} parent=5 // pred_region
      %s142 = ssub.s32 %s9, 1
      %p143 = scmp.lt.s32.totalorder %s14, 1
      %s144 = scalar_select %p143, %s14, 1
      %s145 = smul.addr %s144, 32
      %s146 = smul.addr %s145, 4
      %s147 = scalar_lea.vmem %s0, %s146
      %p148 = pneg %p35
      %p149 = pneg %p32
      %p150 = pneg %p56
      %p151 = pneg %p53
      %p152 = pneg %p77
      %p153 = pneg %p74
      %p154 = pneg %p103
      %p155 = pneg %p100
      %p156 = scmp.lt.s32.totalorder %s14, 1
      %s157 = scalar_select %p156, %s14, 1
      %s158 = smul.addr %s157, 32
      %s159 = smul.addr %s158, 8
      %s160 = scalar_lea.vmem %s3, %s159
      %p161 = scmp.lt.s32.totalorder %s14, 1
      %s162 = scalar_select %p161, %s14, 1
      %s163 = smul.addr %s162, 32
      %s164 = smul.addr %s163, 4
      %s165 = scalar_lea.vmem %s0, %s164
      %p166 = scmp.lt.s32.totalorder %s14, 1
      %s167 = scalar_select %p166, %s14, 1
      %s168 = smul.addr %s167, 32
      %s169 = smul.addr %s168, 8
      %s170 = scalar_lea.vmem %s3, %s169
      %vm172 = vcmask 31744
      %173 = vst.msk [vmem:[#allocation2] sm:$0xff] %vm172, 0.0
      %174 = vst.msk [vmem:[#allocation2 + $0x8] sm:$0xff] %vm172, 0.0
      %vm175 = vcmask 25600
      %176 = vst.msk [vmem:[#allocation2 + $0x10] sm:$0x3] %vm175, 0.0
      %177 = vst.msk [vmem:[#allocation2 + $0x18] sm:$0xff] %vm172, 0.0
      %178 = vst.msk [vmem:[#allocation2 + $0x20] sm:$0xff] %vm172, 0.0
      %179 = vst.msk [vmem:[#allocation2 + $0x28] sm:$0x3] %vm175, 0.0
      %180 = vst.msk [vmem:[#allocation2 + $0x30] sm:$0xff] %vm172, 0.0
      %181 = vst.msk [vmem:[#allocation2 + $0x38] sm:$0xff] %vm172, 0.0
      %182 = vst.msk [vmem:[#allocation2 + $0x40] sm:$0x3] %vm175, 0.0
      %183 = vst.msk [vmem:[#allocation2 + $0x48] sm:$0xff] %vm172, 0.0
      %184 = vst.msk [vmem:[#allocation2 + $0x50] sm:$0xff] %vm172, 0.0
      %185 = vst.msk [vmem:[#allocation2 + $0x58] sm:$0x3] %vm175, 0.0
      %186 = vst.msk [vmem:[#allocation2 + $0x60] sm:$0xff] %vm172, 0.0
      %187 = vst.msk [vmem:[#allocation2 + $0x68] sm:$0xff] %vm172, 0.0
      %188 = vst.msk [vmem:[#allocation2 + $0x70] sm:$0x3] %vm175, 0.0
      %189 = vst.msk [vmem:[#allocation2 + $0x78] sm:$0xff] %vm172, 0.0
      %190 = vst.msk [vmem:[#allocation2 + $0x80] sm:$0xff] %vm172, 0.0
      %191 = vst.msk [vmem:[#allocation2 + $0x88] sm:$0x3] %vm175, 0.0
      %192 = vst.msk [vmem:[#allocation2 + $0x90] sm:$0xff] %vm172, 0.0
      %193 = vst.msk [vmem:[#allocation2 + $0x98] sm:$0xff] %vm172, 0.0
      %194 = vst.msk [vmem:[#allocation2 + $0xa0] sm:$0x3] %vm175, 0.0
      %195 = vst.msk [vmem:[#allocation2 + $0xa8] sm:$0xff] %vm172, 0.0
      %196 = vst.msk [vmem:[#allocation2 + $0xb0] sm:$0xff] %vm172, 0.0
      %197 = vst.msk [vmem:[#allocation2 + $0xb8] sm:$0x3] %vm175, 0.0
      %198 = vst.msk [vmem:[#allocation2 + $0xc0] sm:$0xff] %vm172, 0.0
      %199 = vst.msk [vmem:[#allocation2 + $0xc8] sm:$0xff] %vm172, 0.0
      %200 = vst.msk [vmem:[#allocation2 + $0xd0] sm:$0x3] %vm175, 0.0
      %201 = vst.msk [vmem:[#allocation2 + $0xd8] sm:$0xff] %vm172, 0.0
      %202 = vst.msk [vmem:[#allocation2 + $0xe0] sm:$0xff] %vm172, 0.0
      %203 = vst.msk [vmem:[#allocation2 + $0xe8] sm:$0x3] %vm175, 0.0
      %204 = vst.msk [vmem:[#allocation2 + $0xf0] sm:$0xff] %vm172, 0.0
      %205 = vst.msk [vmem:[#allocation2 + $0xf8] sm:$0xff] %vm172, 0.0
      %206 = vst.msk [vmem:[#allocation2 + $0x100] sm:$0x3] %vm175, 0.0
      %207 = vst.msk [vmem:[#allocation2 + $0x108] sm:$0xff] %vm172, 0.0
      %208 = vst.msk [vmem:[#allocation2 + $0x110] sm:$0xff] %vm172, 0.0
      %209 = vst.msk [vmem:[#allocation2 + $0x118] sm:$0x3] %vm175, 0.0
      %210 = vst.msk [vmem:[#allocation2 + $0x120] sm:$0xff] %vm172, 0.0
      %211 = vst.msk [vmem:[#allocation2 + $0x128] sm:$0xff] %vm172, 0.0
      %212 = vst.msk [vmem:[#allocation2 + $0x130] sm:$0x3] %vm175, 0.0
      %213 = vst.msk [vmem:[#allocation2 + $0x138] sm:$0xff] %vm172, 0.0
      %214 = vst.msk [vmem:[#allocation2 + $0x140] sm:$0xff] %vm172, 0.0
      %215 = vst.msk [vmem:[#allocation2 + $0x148] sm:$0x3] %vm175, 0.0
      %216 = vst.msk [vmem:[#allocation2 + $0x150] sm:$0xff] %vm172, 0.0
      %217 = vst.msk [vmem:[#allocation2 + $0x158] sm:$0xff] %vm172, 0.0
      %218 = vst.msk [vmem:[#allocation2 + $0x160] sm:$0x3] %vm175, 0.0
      %219 = vst.msk [vmem:[#allocation2 + $0x168] sm:$0xff] %vm172, 0.0
      %220 = vst.msk [vmem:[#allocation2 + $0x170] sm:$0xff] %vm172, 0.0
      %221 = vst.msk [vmem:[#allocation2 + $0x178] sm:$0x3] %vm175, 0.0
      %222 = vst.msk [vmem:[#allocation2 + $0x180] sm:$0xff] %vm172, 0.0
      %223 = vst.msk [vmem:[#allocation2 + $0x188] sm:$0xff] %vm172, 0.0
      %224 = vst.msk [vmem:[#allocation2 + $0x190] sm:$0x3] %vm175, 0.0
      %225 = vst.msk [vmem:[#allocation2 + $0x198] sm:$0xff] %vm172, 0.0
      %226 = vst.msk [vmem:[#allocation2 + $0x1a0] sm:$0xff] %vm172, 0.0
      %227 = vst.msk [vmem:[#allocation2 + $0x1a8] sm:$0x3] %vm175, 0.0
      %v228 = vld [vmem:[%s165] sm:$0xf]
      %v229 = vld [vmem:[%s165 + $0x4] sm:$0xf]
      %v230 = vld [vmem:[%s165 + $0x8] sm:$0xf]
      %v231 = vld [vmem:[%s165 + $0xc] sm:$0xf]
      %v232 = vld [vmem:[%s165 + $0x10] sm:$0xf]
      %v233 = vld [vmem:[%s165 + $0x14] sm:$0xf]
      %v234 = vld [vmem:[%s165 + $0x18] sm:$0xf]
      %v235 = vld [vmem:[%s165 + $0x1c] sm:$0xf]
      %v236 = vld [vmem:[%s165 + $0x20] sm:$0xf]
      %v237 = vld [vmem:[%s165 + $0x24] sm:$0xf]
      %v238 = vld [vmem:[%s165 + $0x28] sm:$0xf]
      %v239 = vld [vmem:[%s165 + $0x2c] sm:$0xf]
      %v240 = vld [vmem:[%s165 + $0x30] sm:$0xf]
      %v241 = vld [vmem:[%s165 + $0x34] sm:$0xf]
      %v242 = vld [vmem:[%s165 + $0x38] sm:$0xf]
      %v243 = vld [vmem:[%s165 + $0x3c] sm:$0xf]
      %v244 = vld [vmem:[%s165 + $0x40] sm:$0xf]
      %v245 = vld [vmem:[%s165 + $0x44] sm:$0xf]
      %v246 = vld [vmem:[%s165 + $0x48] sm:$0xf]
      %v247 = vld [vmem:[%s165 + $0x4c] sm:$0xf]
      %v248 = vld [vmem:[%s165 + $0x50] sm:$0xf]
      %v249 = vld [vmem:[%s165 + $0x54] sm:$0xf]
      %v250 = vld [vmem:[%s165 + $0x58] sm:$0xf]
      %v251 = vld [vmem:[%s165 + $0x5c] sm:$0xf]
      %v252 = vld [vmem:[%s165 + $0x60] sm:$0xf]
      %v253 = vld [vmem:[%s165 + $0x64] sm:$0xf]
      %v254 = vld [vmem:[%s165 + $0x68] sm:$0xf]
      %v255 = vld [vmem:[%s165 + $0x6c] sm:$0xf]
      %v256 = vld [vmem:[%s165 + $0x70] sm:$0xf]
      %v257 = vld [vmem:[%s165 + $0x74] sm:$0xf]
      %v258 = vld [vmem:[%s165 + $0x78] sm:$0xf]
      %v259 = vld [vmem:[%s165 + $0x7c] sm:$0xf]
      %v260 = vunpack.c.l.bf16 %v228
      %v261 = vunpack.c.l.bf16 %v229
      %v262 = vunpack.c.l.bf16 %v230
      %v263 = vunpack.c.l.bf16 %v231
      %v264 = vunpack.c.l.bf16 %v232
      %v265 = vunpack.c.l.bf16 %v233
      %v266 = vunpack.c.l.bf16 %v234
      %v267 = vunpack.c.l.bf16 %v235
      %v268 = vunpack.c.l.bf16 %v236
      %v269 = vunpack.c.l.bf16 %v237
      %v270 = vunpack.c.l.bf16 %v238
      %v271 = vunpack.c.l.bf16 %v239
      %v272 = vunpack.c.l.bf16 %v240
      %v273 = vunpack.c.l.bf16 %v241
      %v274 = vunpack.c.l.bf16 %v242
      %v275 = vunpack.c.l.bf16 %v243
      %v276 = vunpack.c.l.bf16 %v244
      %v277 = vunpack.c.l.bf16 %v245
      %v278 = vunpack.c.l.bf16 %v246
      %v279 = vunpack.c.l.bf16 %v247
      %v280 = vunpack.c.l.bf16 %v248
      %v281 = vunpack.c.l.bf16 %v249
      %v282 = vunpack.c.l.bf16 %v250
      %v283 = vunpack.c.l.bf16 %v251
      %v284 = vunpack.c.l.bf16 %v252
      %v285 = vunpack.c.l.bf16 %v253
      %v286 = vunpack.c.l.bf16 %v254
      %v287 = vunpack.c.l.bf16 %v255
      %v288 = vunpack.c.l.bf16 %v256
      %v289 = vunpack.c.l.bf16 %v257
      %v290 = vunpack.c.l.bf16 %v258
      %v291 = vunpack.c.l.bf16 %v259
      %s292 = scalar_lea.vmem [#allocation2], 24
      %293 = vst.msk [vmem:[%s292 + $0x1] sm:$0xff] %vm172, %v260
      %294 = vst.msk [vmem:[%s292 + $0x9] sm:$0xff] %vm172, %v261
      %295 = vst.msk [vmem:[%s292 + $0x19] sm:$0xff] %vm172, %v262
      %296 = vst.msk [vmem:[%s292 + $0x21] sm:$0xff] %vm172, %v263
      %297 = vst.msk [vmem:[%s292 + $0x31] sm:$0xff] %vm172, %v264
      %298 = vst.msk [vmem:[%s292 + $0x39] sm:$0xff] %vm172, %v265
      %299 = vst.msk [vmem:[%s292 + $0x49] sm:$0xff] %vm172, %v266
      %300 = vst.msk [vmem:[%s292 + $0x51] sm:$0xff] %vm172, %v267
      %301 = vst.msk [vmem:[%s292 + $0x61] sm:$0xff] %vm172, %v268
      %302 = vst.msk [vmem:[%s292 + $0x69] sm:$0xff] %vm172, %v269
      %303 = vst.msk [vmem:[%s292 + $0x79] sm:$0xff] %vm172, %v270
      %304 = vst.msk [vmem:[%s292 + $0x81] sm:$0xff] %vm172, %v271
      %305 = vst.msk [vmem:[%s292 + $0x91] sm:$0xff] %vm172, %v272
      %306 = vst.msk [vmem:[%s292 + $0x99] sm:$0xff] %vm172, %v273
      %307 = vst.msk [vmem:[%s292 + $0xa9] sm:$0xff] %vm172, %v274
      %308 = vst.msk [vmem:[%s292 + $0xb1] sm:$0xff] %vm172, %v275
      %309 = vst.msk [vmem:[%s292 + $0xc1] sm:$0xff] %vm172, %v276
      %310 = vst.msk [vmem:[%s292 + $0xc9] sm:$0xff] %vm172, %v277
      %311 = vst.msk [vmem:[%s292 + $0xd9] sm:$0xff] %vm172, %v278
      %312 = vst.msk [vmem:[%s292 + $0xe1] sm:$0xff] %vm172, %v279
      %313 = vst.msk [vmem:[%s292 + $0xf1] sm:$0xff] %vm172, %v280
      %314 = vst.msk [vmem:[%s292 + $0xf9] sm:$0xff] %vm172, %v281
      %315 = vst.msk [vmem:[%s292 + $0x109] sm:$0xff] %vm172, %v282
      %316 = vst.msk [vmem:[%s292 + $0x111] sm:$0xff] %vm172, %v283
      %317 = vst.msk [vmem:[%s292 + $0x121] sm:$0xff] %vm172, %v284
      %318 = vst.msk [vmem:[%s292 + $0x129] sm:$0xff] %vm172, %v285
      %319 = vst.msk [vmem:[%s292 + $0x139] sm:$0xff] %vm172, %v286
      %320 = vst.msk [vmem:[%s292 + $0x141] sm:$0xff] %vm172, %v287
      %321 = vst.msk [vmem:[%s292 + $0x151] sm:$0xff] %vm172, %v288
      %322 = vst.msk [vmem:[%s292 + $0x159] sm:$0xff] %vm172, %v289
      %323 = vst.msk [vmem:[%s292 + $0x169] sm:$0xff] %vm172, %v290
      %324 = vst.msk [vmem:[%s292 + $0x171] sm:$0xff] %vm172, %v291
      %v325 = vld [vmem:[#allocation2] sm:$0xff]
      %v326 = vld [vmem:[#allocation2 + $0x8] sm:$0xff]
      %v327 = vld [vmem:[#allocation2 + $0x18] sm:$0xff]
      %v328 = vld [vmem:[#allocation2 + $0x20] sm:$0xff]
      %v329 = vld [vmem:[#allocation2 + $0x30] sm:$0xff]
      %v330 = vld [vmem:[#allocation2 + $0x38] sm:$0xff]
      %v331 = vld [vmem:[#allocation2 + $0x48] sm:$0xff]
      %v332 = vld [vmem:[#allocation2 + $0x50] sm:$0xff]
      %v333 = vld [vmem:[#allocation2 + $0x60] sm:$0xff]
      %v334 = vld [vmem:[#allocation2 + $0x68] sm:$0xff]
      %v335 = vld [vmem:[#allocation2 + $0x78] sm:$0xff]
      %v336 = vld [vmem:[#allocation2 + $0x80] sm:$0xff]
      %v337 = vld [vmem:[#allocation2 + $0x90] sm:$0xff]
      %v338 = vld [vmem:[#allocation2 + $0x98] sm:$0xff]
      %v339 = vld [vmem:[#allocation2 + $0xa8] sm:$0xff]
      %v340 = vld [vmem:[#allocation2 + $0xb0] sm:$0xff]
      %v341 = vld [vmem:[#allocation2 + $0xc0] sm:$0xff]
      %v342 = vld [vmem:[#allocation2 + $0xc8] sm:$0xff]
      %v343 = vld [vmem:[#allocation2 + $0xd8] sm:$0xff]
      %v344 = vld [vmem:[#allocation2 + $0xe0] sm:$0xff]
      %v345 = vld [vmem:[#allocation2 + $0xf0] sm:$0xff]
      %v346 = vld [vmem:[#allocation2 + $0xf8] sm:$0xff]
      %v347 = vld [vmem:[#allocation2 + $0x108] sm:$0xff]
      %v348 = vld [vmem:[#allocation2 + $0x110] sm:$0xff]
      %v349 = vld [vmem:[#allocation2 + $0x120] sm:$0xff]
      %v350 = vld [vmem:[#allocation2 + $0x128] sm:$0xff]
      %v351 = vld [vmem:[#allocation2 + $0x138] sm:$0xff]
      %v352 = vld [vmem:[#allocation2 + $0x140] sm:$0xff]
      %v353 = vld [vmem:[#allocation2 + $0x150] sm:$0xff]
      %v354 = vld [vmem:[#allocation2 + $0x158] sm:$0xff]
      %v355 = vld [vmem:[#allocation2 + $0x168] sm:$0xff]
      %v356 = vld [vmem:[#allocation2 + $0x170] sm:$0xff]
      %v357 = vpack.c.bf16 %v326, %v325
      %v358 = vpack.c.bf16 %v328, %v327
      %v359 = vpack.c.bf16 %v330, %v329
      %v360 = vpack.c.bf16 %v332, %v331
      %v361 = vpack.c.bf16 %v334, %v333
      %v362 = vpack.c.bf16 %v336, %v335
      %v363 = vpack.c.bf16 %v338, %v337
      %v364 = vpack.c.bf16 %v340, %v339
      %v365 = vpack.c.bf16 %v342, %v341
      %v366 = vpack.c.bf16 %v344, %v343
      %v367 = vpack.c.bf16 %v346, %v345
      %v368 = vpack.c.bf16 %v348, %v347
      %v369 = vpack.c.bf16 %v350, %v349
      %v370 = vpack.c.bf16 %v352, %v351
      %v371 = vpack.c.bf16 %v354, %v353
      %v372 = vpack.c.bf16 %v356, %v355
      %v373 = vld [vmem:[#allocation2 + $0x1] sm:$0xff]
      %v374 = vld [vmem:[#allocation2 + $0x9] sm:$0xff]
      %v375 = vld [vmem:[#allocation2 + $0x19] sm:$0xff]
      %v376 = vld [vmem:[#allocation2 + $0x21] sm:$0xff]
      %v377 = vld [vmem:[#allocation2 + $0x31] sm:$0xff]
      %v378 = vld [vmem:[#allocation2 + $0x39] sm:$0xff]
      %v379 = vld [vmem:[#allocation2 + $0x49] sm:$0xff]
      %v380 = vld [vmem:[#allocation2 + $0x51] sm:$0xff]
      %v381 = vld [vmem:[#allocation2 + $0x61] sm:$0xff]
      %v382 = vld [vmem:[#allocation2 + $0x69] sm:$0xff]
      %v383 = vld [vmem:[#allocation2 + $0x79] sm:$0xff]
      %v384 = vld [vmem:[#allocation2 + $0x81] sm:$0xff]
      %v385 = vld [vmem:[#allocation2 + $0x91] sm:$0xff]
      %v386 = vld [vmem:[#allocation2 + $0x99] sm:$0xff]
      %v387 = vld [vmem:[#allocation2 + $0xa9] sm:$0xff]
      %v388 = vld [vmem:[#allocation2 + $0xb1] sm:$0xff]
      %v389 = vld [vmem:[#allocation2 + $0xc1] sm:$0xff]
      %v390 = vld [vmem:[#allocation2 + $0xc9] sm:$0xff]
      %v391 = vld [vmem:[#allocation2 + $0xd9] sm:$0xff]
      %v392 = vld [vmem:[#allocation2 + $0xe1] sm:$0xff]
      %v393 = vld [vmem:[#allocation2 + $0xf1] sm:$0xff]
      %v394 = vld [vmem:[#allocation2 + $0xf9] sm:$0xff]
      %v395 = vld [vmem:[#allocation2 + $0x109] sm:$0xff]
      %v396 = vld [vmem:[#allocation2 + $0x111] sm:$0xff]
      %v397 = vld [vmem:[#allocation2 + $0x121] sm:$0xff]
      %v398 = vld [vmem:[#allocation2 + $0x129] sm:$0xff]
      %v399 = vld [vmem:[#allocation2 + $0x139] sm:$0xff]
      %v400 = vld [vmem:[#allocation2 + $0x141] sm:$0xff]
      %v401 = vld [vmem:[#allocation2 + $0x151] sm:$0xff]
      %v402 = vld [vmem:[#allocation2 + $0x159] sm:$0xff]
      %v403 = vld [vmem:[#allocation2 + $0x169] sm:$0xff]
      %v404 = vld [vmem:[#allocation2 + $0x171] sm:$0xff]
      %v405 = vpack.c.bf16 %v374, %v373
      %v406 = vpack.c.bf16 %v376, %v375
      %v407 = vpack.c.bf16 %v378, %v377
      %v408 = vpack.c.bf16 %v380, %v379
      %v409 = vpack.c.bf16 %v382, %v381
      %v410 = vpack.c.bf16 %v384, %v383
      %v411 = vpack.c.bf16 %v386, %v385
      %v412 = vpack.c.bf16 %v388, %v387
      %v413 = vpack.c.bf16 %v390, %v389
      %v414 = vpack.c.bf16 %v392, %v391
      %v415 = vpack.c.bf16 %v394, %v393
      %v416 = vpack.c.bf16 %v396, %v395
      %v417 = vpack.c.bf16 %v398, %v397
      %v418 = vpack.c.bf16 %v400, %v399
      %v419 = vpack.c.bf16 %v402, %v401
      %v420 = vpack.c.bf16 %v404, %v403
      %v421 = vld [vmem:[#allocation2 + $0x2] sm:$0xff]
      %v422 = vld [vmem:[#allocation2 + $0xa] sm:$0xff]
      %v423 = vld [vmem:[#allocation2 + $0x1a] sm:$0xff]
      %v424 = vld [vmem:[#allocation2 + $0x22] sm:$0xff]
      %v425 = vld [vmem:[#allocation2 + $0x32] sm:$0xff]
      %v426 = vld [vmem:[#allocation2 + $0x3a] sm:$0xff]
      %v427 = vld [vmem:[#allocation2 + $0x4a] sm:$0xff]
      %v428 = vld [vmem:[#allocation2 + $0x52] sm:$0xff]
      %v429 = vld [vmem:[#allocation2 + $0x62] sm:$0xff]
      %v430 = vld [vmem:[#allocation2 + $0x6a] sm:$0xff]
      %v431 = vld [vmem:[#allocation2 + $0x7a] sm:$0xff]
      %v432 = vld [vmem:[#allocation2 + $0x82] sm:$0xff]
      %v433 = vld [vmem:[#allocation2 + $0x92] sm:$0xff]
      %v434 = vld [vmem:[#allocation2 + $0x9a] sm:$0xff]
      %v435 = vld [vmem:[#allocation2 + $0xaa] sm:$0xff]
      %v436 = vld [vmem:[#allocation2 + $0xb2] sm:$0xff]
      %v437 = vld [vmem:[#allocation2 + $0xc2] sm:$0xff]
      %v438 = vld [vmem:[#allocation2 + $0xca] sm:$0xff]
      %v439 = vld [vmem:[#allocation2 + $0xda] sm:$0xff]
      %v440 = vld [vmem:[#allocation2 + $0xe2] sm:$0xff]
      %v441 = vld [vmem:[#allocation2 + $0xf2] sm:$0xff]
      %v442 = vld [vmem:[#allocation2 + $0xfa] sm:$0xff]
      %v443 = vld [vmem:[#allocation2 + $0x10a] sm:$0xff]
      %v444 = vld [vmem:[#allocation2 + $0x112] sm:$0xff]
      %v445 = vld [vmem:[#allocation2 + $0x122] sm:$0xff]
      %v446 = vld [vmem:[#allocation2 + $0x12a] sm:$0xff]
      %v447 = vld [vmem:[#allocation2 + $0x13a] sm:$0xff]
      %v448 = vld [vmem:[#allocation2 + $0x142] sm:$0xff]
      %v449 = vld [vmem:[#allocation2 + $0x152] sm:$0xff]
      %v450 = vld [vmem:[#allocation2 + $0x15a] sm:$0xff]
      %v451 = vld [vmem:[#allocation2 + $0x16a] sm:$0xff]
      %v452 = vld [vmem:[#allocation2 + $0x172] sm:$0xff]
      %v453 = vpack.c.bf16 %v422, %v421
      %v454 = vpack.c.bf16 %v424, %v423
      %v455 = vpack.c.bf16 %v426, %v425
      %v456 = vpack.c.bf16 %v428, %v427
      %v457 = vpack.c.bf16 %v430, %v429
      %v458 = vpack.c.bf16 %v432, %v431
      %v459 = vpack.c.bf16 %v434, %v433
      %v460 = vpack.c.bf16 %v436, %v435
      %v461 = vpack.c.bf16 %v438, %v437
      %v462 = vpack.c.bf16 %v440, %v439
      %v463 = vpack.c.bf16 %v442, %v441
      %v464 = vpack.c.bf16 %v444, %v443
      %v465 = vpack.c.bf16 %v446, %v445
      %v466 = vpack.c.bf16 %v448, %v447
      %v467 = vpack.c.bf16 %v450, %v449
      %v468 = vpack.c.bf16 %v452, %v451
      %v469 = vld [vmem:[%s292] sm:$0xff]
      %v470 = vld [vmem:[%s292 + $0x8] sm:$0xff]
      %v471 = vld [vmem:[%s292 + $0x18] sm:$0xff]
      %v472 = vld [vmem:[%s292 + $0x20] sm:$0xff]
      %v473 = vld [vmem:[%s292 + $0x30] sm:$0xff]
      %v474 = vld [vmem:[%s292 + $0x38] sm:$0xff]
      %v475 = vld [vmem:[%s292 + $0x48] sm:$0xff]
      %v476 = vld [vmem:[%s292 + $0x50] sm:$0xff]
      %v477 = vld [vmem:[%s292 + $0x60] sm:$0xff]
      %v478 = vld [vmem:[%s292 + $0x68] sm:$0xff]
      %v479 = vld [vmem:[%s292 + $0x78] sm:$0xff]
      %v480 = vld [vmem:[%s292 + $0x80] sm:$0xff]
      %v481 = vld [vmem:[%s292 + $0x90] sm:$0xff]
      %v482 = vld [vmem:[%s292 + $0x98] sm:$0xff]
      %v483 = vld [vmem:[%s292 + $0xa8] sm:$0xff]
      %v484 = vld [vmem:[%s292 + $0xb0] sm:$0xff]
      %v485 = vld [vmem:[%s292 + $0xc0] sm:$0xff]
      %v486 = vld [vmem:[%s292 + $0xc8] sm:$0xff]
      %v487 = vld [vmem:[%s292 + $0xd8] sm:$0xff]
      %v488 = vld [vmem:[%s292 + $0xe0] sm:$0xff]
      %v489 = vld [vmem:[%s292 + $0xf0] sm:$0xff]
      %v490 = vld [vmem:[%s292 + $0xf8] sm:$0xff]
      %v491 = vld [vmem:[%s292 + $0x108] sm:$0xff]
      %v492 = vld [vmem:[%s292 + $0x110] sm:$0xff]
      %v493 = vld [vmem:[%s292 + $0x120] sm:$0xff]
      %v494 = vld [vmem:[%s292 + $0x128] sm:$0xff]
      %v495 = vld [vmem:[%s292 + $0x138] sm:$0xff]
      %v496 = vld [vmem:[%s292 + $0x140] sm:$0xff]
      %v497 = vld [vmem:[%s292 + $0x150] sm:$0xff]
      %v498 = vld [vmem:[%s292 + $0x158] sm:$0xff]
      %v499 = vld [vmem:[%s292 + $0x168] sm:$0xff]
      %v500 = vld [vmem:[%s292 + $0x170] sm:$0xff]
      %v501 = vpack.c.bf16 %v470, %v469
      %v502 = vpack.c.bf16 %v472, %v471
      %v503 = vpack.c.bf16 %v474, %v473
      %v504 = vpack.c.bf16 %v476, %v475
      %v505 = vpack.c.bf16 %v478, %v477
      %v506 = vpack.c.bf16 %v480, %v479
      %v507 = vpack.c.bf16 %v482, %v481
      %v508 = vpack.c.bf16 %v484, %v483
      %v509 = vpack.c.bf16 %v486, %v485
      %v510 = vpack.c.bf16 %v488, %v487
      %v511 = vpack.c.bf16 %v490, %v489
      %v512 = vpack.c.bf16 %v492, %v491
      %v513 = vpack.c.bf16 %v494, %v493
      %v514 = vpack.c.bf16 %v496, %v495
      %v515 = vpack.c.bf16 %v498, %v497
      %v516 = vpack.c.bf16 %v500, %v499
      %v517 = vld [vmem:[%s292 + $0x1] sm:$0xff]
      %v518 = vld [vmem:[%s292 + $0x9] sm:$0xff]
      %v519 = vld [vmem:[%s292 + $0x19] sm:$0xff]
      %v520 = vld [vmem:[%s292 + $0x21] sm:$0xff]
      %v521 = vld [vmem:[%s292 + $0x31] sm:$0xff]
      %v522 = vld [vmem:[%s292 + $0x39] sm:$0xff]
      %v523 = vld [vmem:[%s292 + $0x49] sm:$0xff]
      %v524 = vld [vmem:[%s292 + $0x51] sm:$0xff]
      %v525 = vld [vmem:[%s292 + $0x61] sm:$0xff]
      %v526 = vld [vmem:[%s292 + $0x69] sm:$0xff]
      %v527 = vld [vmem:[%s292 + $0x79] sm:$0xff]
      %v528 = vld [vmem:[%s292 + $0x81] sm:$0xff]
      %v529 = vld [vmem:[%s292 + $0x91] sm:$0xff]
      %v530 = vld [vmem:[%s292 + $0x99] sm:$0xff]
      %v531 = vld [vmem:[%s292 + $0xa9] sm:$0xff]
      %v532 = vld [vmem:[%s292 + $0xb1] sm:$0xff]
      %v533 = vld [vmem:[%s292 + $0xc1] sm:$0xff]
      %v534 = vld [vmem:[%s292 + $0xc9] sm:$0xff]
      %v535 = vld [vmem:[%s292 + $0xd9] sm:$0xff]
      %v536 = vld [vmem:[%s292 + $0xe1] sm:$0xff]
      %v537 = vld [vmem:[%s292 + $0xf1] sm:$0xff]
      %v538 = vld [vmem:[%s292 + $0xf9] sm:$0xff]
      %v539 = vld [vmem:[%s292 + $0x109] sm:$0xff]
      %v540 = vld [vmem:[%s292 + $0x111] sm:$0xff]
      %v541 = vld [vmem:[%s292 + $0x121] sm:$0xff]
      %v542 = vld [vmem:[%s292 + $0x129] sm:$0xff]
      %v543 = vld [vmem:[%s292 + $0x139] sm:$0xff]
      %v544 = vld [vmem:[%s292 + $0x141] sm:$0xff]
      %v545 = vld [vmem:[%s292 + $0x151] sm:$0xff]
      %v546 = vld [vmem:[%s292 + $0x159] sm:$0xff]
      %v547 = vld [vmem:[%s292 + $0x169] sm:$0xff]
      %v548 = vld [vmem:[%s292 + $0x171] sm:$0xff]
      %v549 = vpack.c.bf16 %v518, %v517
      %v550 = vpack.c.bf16 %v520, %v519
      %v551 = vpack.c.bf16 %v522, %v521
      %v552 = vpack.c.bf16 %v524, %v523
      %v553 = vpack.c.bf16 %v526, %v525
      %v554 = vpack.c.bf16 %v528, %v527
      %v555 = vpack.c.bf16 %v530, %v529
      %v556 = vpack.c.bf16 %v532, %v531
      %v557 = vpack.c.bf16 %v534, %v533
      %v558 = vpack.c.bf16 %v536, %v535
      %v559 = vpack.c.bf16 %v538, %v537
      %v560 = vpack.c.bf16 %v540, %v539
      %v561 = vpack.c.bf16 %v542, %v541
      %v562 = vpack.c.bf16 %v544, %v543
      %v563 = vpack.c.bf16 %v546, %v545
      %v564 = vpack.c.bf16 %v548, %v547
      %v565 = vld [vmem:[%s292 + $0x2] sm:$0xff]
      %v566 = vld [vmem:[%s292 + $0xa] sm:$0xff]
      %v567 = vld [vmem:[%s292 + $0x1a] sm:$0xff]
      %v568 = vld [vmem:[%s292 + $0x22] sm:$0xff]
      %v569 = vld [vmem:[%s292 + $0x32] sm:$0xff]
      %v570 = vld [vmem:[%s292 + $0x3a] sm:$0xff]
      %v571 = vld [vmem:[%s292 + $0x4a] sm:$0xff]
      %v572 = vld [vmem:[%s292 + $0x52] sm:$0xff]
      %v573 = vld [vmem:[%s292 + $0x62] sm:$0xff]
      %v574 = vld [vmem:[%s292 + $0x6a] sm:$0xff]
      %v575 = vld [vmem:[%s292 + $0x7a] sm:$0xff]
      %v576 = vld [vmem:[%s292 + $0x82] sm:$0xff]
      %v577 = vld [vmem:[%s292 + $0x92] sm:$0xff]
      %v578 = vld [vmem:[%s292 + $0x9a] sm:$0xff]
      %v579 = vld [vmem:[%s292 + $0xaa] sm:$0xff]
      %v580 = vld [vmem:[%s292 + $0xb2] sm:$0xff]
      %v581 = vld [vmem:[%s292 + $0xc2] sm:$0xff]
      %v582 = vld [vmem:[%s292 + $0xca] sm:$0xff]
      %v583 = vld [vmem:[%s292 + $0xda] sm:$0xff]
      %v584 = vld [vmem:[%s292 + $0xe2] sm:$0xff]
      %v585 = vld [vmem:[%s292 + $0xf2] sm:$0xff]
      %v586 = vld [vmem:[%s292 + $0xfa] sm:$0xff]
      %v587 = vld [vmem:[%s292 + $0x10a] sm:$0xff]
      %v588 = vld [vmem:[%s292 + $0x112] sm:$0xff]
      %v589 = vld [vmem:[%s292 + $0x122] sm:$0xff]
      %v590 = vld [vmem:[%s292 + $0x12a] sm:$0xff]
      %v591 = vld [vmem:[%s292 + $0x13a] sm:$0xff]
      %v592 = vld [vmem:[%s292 + $0x142] sm:$0xff]
      %v593 = vld [vmem:[%s292 + $0x152] sm:$0xff]
      %v594 = vld [vmem:[%s292 + $0x15a] sm:$0xff]
      %v595 = vld [vmem:[%s292 + $0x16a] sm:$0xff]
      %v596 = vld [vmem:[%s292 + $0x172] sm:$0xff]
      %v597 = vpack.c.bf16 %v566, %v565
      %v598 = vpack.c.bf16 %v568, %v567
      %v599 = vpack.c.bf16 %v570, %v569
      %v600 = vpack.c.bf16 %v572, %v571
      %v601 = vpack.c.bf16 %v574, %v573
      %v602 = vpack.c.bf16 %v576, %v575
      %v603 = vpack.c.bf16 %v578, %v577
      %v604 = vpack.c.bf16 %v580, %v579
      %v605 = vpack.c.bf16 %v582, %v581
      %v606 = vpack.c.bf16 %v584, %v583
      %v607 = vpack.c.bf16 %v586, %v585
      %v608 = vpack.c.bf16 %v588, %v587
      %v609 = vpack.c.bf16 %v590, %v589
      %v610 = vpack.c.bf16 %v592, %v591
      %v611 = vpack.c.bf16 %v594, %v593
      %v612 = vpack.c.bf16 %v596, %v595
      %s613 = scalar_lea.vmem [#allocation2], 48
      %v614 = vld [vmem:[%s613] sm:$0xff]
      %v615 = vld [vmem:[%s613 + $0x8] sm:$0xff]
      %v616 = vld [vmem:[%s613 + $0x18] sm:$0xff]
      %v617 = vld [vmem:[%s613 + $0x20] sm:$0xff]
      %v618 = vld [vmem:[%s613 + $0x30] sm:$0xff]
      %v619 = vld [vmem:[%s613 + $0x38] sm:$0xff]
      %v620 = vld [vmem:[%s613 + $0x48] sm:$0xff]
      %v621 = vld [vmem:[%s613 + $0x50] sm:$0xff]
      %v622 = vld [vmem:[%s613 + $0x60] sm:$0xff]
      %v623 = vld [vmem:[%s613 + $0x68] sm:$0xff]
      %v624 = vld [vmem:[%s613 + $0x78] sm:$0xff]
      %v625 = vld [vmem:[%s613 + $0x80] sm:$0xff]
      %v626 = vld [vmem:[%s613 + $0x90] sm:$0xff]
      %v627 = vld [vmem:[%s613 + $0x98] sm:$0xff]
      %v628 = vld [vmem:[%s613 + $0xa8] sm:$0xff]
      %v629 = vld [vmem:[%s613 + $0xb0] sm:$0xff]
      %v630 = vld [vmem:[%s613 + $0xc0] sm:$0xff]
      %v631 = vld [vmem:[%s613 + $0xc8] sm:$0xff]
      %v632 = vld [vmem:[%s613 + $0xd8] sm:$0xff]
      %v633 = vld [vmem:[%s613 + $0xe0] sm:$0xff]
      %v634 = vld [vmem:[%s613 + $0xf0] sm:$0xff]
      %v635 = vld [vmem:[%s613 + $0xf8] sm:$0xff]
      %v636 = vld [vmem:[%s613 + $0x108] sm:$0xff]
      %v637 = vld [vmem:[%s613 + $0x110] sm:$0xff]
      %v638 = vld [vmem:[%s613 + $0x120] sm:$0xff]
      %v639 = vld [vmem:[%s613 + $0x128] sm:$0xff]
      %v640 = vld [vmem:[%s613 + $0x138] sm:$0xff]
      %v641 = vld [vmem:[%s613 + $0x140] sm:$0xff]
      %v642 = vld [vmem:[%s613 + $0x150] sm:$0xff]
      %v643 = vld [vmem:[%s613 + $0x158] sm:$0xff]
      %v644 = vld [vmem:[%s613 + $0x168] sm:$0xff]
      %v645 = vld [vmem:[%s613 + $0x170] sm:$0xff]
      %v646 = vpack.c.bf16 %v615, %v614
      %v647 = vpack.c.bf16 %v617, %v616
      %v648 = vpack.c.bf16 %v619, %v618
      %v649 = vpack.c.bf16 %v621, %v620
      %v650 = vpack.c.bf16 %v623, %v622
      %v651 = vpack.c.bf16 %v625, %v624
      %v652 = vpack.c.bf16 %v627, %v626
      %v653 = vpack.c.bf16 %v629, %v628
      %v654 = vpack.c.bf16 %v631, %v630
      %v655 = vpack.c.bf16 %v633, %v632
      %v656 = vpack.c.bf16 %v635, %v634
      %v657 = vpack.c.bf16 %v637, %v636
      %v658 = vpack.c.bf16 %v639, %v638
      %v659 = vpack.c.bf16 %v641, %v640
      %v660 = vpack.c.bf16 %v643, %v642
      %v661 = vpack.c.bf16 %v645, %v644
      %v662 = vld [vmem:[%s613 + $0x1] sm:$0xff]
      %v663 = vld [vmem:[%s613 + $0x9] sm:$0xff]
      %v664 = vld [vmem:[%s613 + $0x19] sm:$0xff]
      %v665 = vld [vmem:[%s613 + $0x21] sm:$0xff]
      %v666 = vld [vmem:[%s613 + $0x31] sm:$0xff]
      %v667 = vld [vmem:[%s613 + $0x39] sm:$0xff]
      %v668 = vld [vmem:[%s613 + $0x49] sm:$0xff]
      %v669 = vld [vmem:[%s613 + $0x51] sm:$0xff]
      %v670 = vld [vmem:[%s613 + $0x61] sm:$0xff]
      %v671 = vld [vmem:[%s613 + $0x69] sm:$0xff]
      %v672 = vld [vmem:[%s613 + $0x79] sm:$0xff]
      %v673 = vld [vmem:[%s613 + $0x81] sm:$0xff]
      %v674 = vld [vmem:[%s613 + $0x91] sm:$0xff]
      %v675 = vld [vmem:[%s613 + $0x99] sm:$0xff]
      %v676 = vld [vmem:[%s613 + $0xa9] sm:$0xff]
      %v677 = vld [vmem:[%s613 + $0xb1] sm:$0xff]
      %v678 = vld [vmem:[%s613 + $0xc1] sm:$0xff]
      %v679 = vld [vmem:[%s613 + $0xc9] sm:$0xff]
      %v680 = vld [vmem:[%s613 + $0xd9] sm:$0xff]
      %v681 = vld [vmem:[%s613 + $0xe1] sm:$0xff]
      %v682 = vld [vmem:[%s613 + $0xf1] sm:$0xff]
      %v683 = vld [vmem:[%s613 + $0xf9] sm:$0xff]
      %v684 = vld [vmem:[%s613 + $0x109] sm:$0xff]
      %v685 = vld [vmem:[%s613 + $0x111] sm:$0xff]
      %v686 = vld [vmem:[%s613 + $0x121] sm:$0xff]
      %v687 = vld [vmem:[%s613 + $0x129] sm:$0xff]
      %v688 = vld [vmem:[%s613 + $0x139] sm:$0xff]
      %v689 = vld [vmem:[%s613 + $0x141] sm:$0xff]
      %v690 = vld [vmem:[%s613 + $0x151] sm:$0xff]
      %v691 = vld [vmem:[%s613 + $0x159] sm:$0xff]
      %v692 = vld [vmem:[%s613 + $0x169] sm:$0xff]
      %v693 = vld [vmem:[%s613 + $0x171] sm:$0xff]
      %v694 = vpack.c.bf16 %v663, %v662
      %v695 = vpack.c.bf16 %v665, %v664
      %v696 = vpack.c.bf16 %v667, %v666
      %v697 = vpack.c.bf16 %v669, %v668
      %v698 = vpack.c.bf16 %v671, %v670
      %v699 = vpack.c.bf16 %v673, %v672
      %v700 = vpack.c.bf16 %v675, %v674
      %v701 = vpack.c.bf16 %v677, %v676
      %v702 = vpack.c.bf16 %v679, %v678
      %v703 = vpack.c.bf16 %v681, %v680
      %v704 = vpack.c.bf16 %v683, %v682
      %v705 = vpack.c.bf16 %v685, %v684
      %v706 = vpack.c.bf16 %v687, %v686
      %v707 = vpack.c.bf16 %v689, %v688
      %v708 = vpack.c.bf16 %v691, %v690
      %v709 = vpack.c.bf16 %v693, %v692
      %v710 = vld [vmem:[%s613 + $0x2] sm:$0xff]
      %v711 = vld [vmem:[%s613 + $0xa] sm:$0xff]
      %v712 = vld [vmem:[%s613 + $0x1a] sm:$0xff]
      %v713 = vld [vmem:[%s613 + $0x22] sm:$0xff]
      %v714 = vld [vmem:[%s613 + $0x32] sm:$0xff]
      %v715 = vld [vmem:[%s613 + $0x3a] sm:$0xff]
      %v716 = vld [vmem:[%s613 + $0x4a] sm:$0xff]
      %v717 = vld [vmem:[%s613 + $0x52] sm:$0xff]
      %v718 = vld [vmem:[%s613 + $0x62] sm:$0xff]
      %v719 = vld [vmem:[%s613 + $0x6a] sm:$0xff]
      %v720 = vld [vmem:[%s613 + $0x7a] sm:$0xff]
      %v721 = vld [vmem:[%s613 + $0x82] sm:$0xff]
      %v722 = vld [vmem:[%s613 + $0x92] sm:$0xff]
      %v723 = vld [vmem:[%s613 + $0x9a] sm:$0xff]
      %v724 = vld [vmem:[%s613 + $0xaa] sm:$0xff]
      %v725 = vld [vmem:[%s613 + $0xb2] sm:$0xff]
      %v726 = vld [vmem:[%s613 + $0xc2] sm:$0xff]
      %v727 = vld [vmem:[%s613 + $0xca] sm:$0xff]
      %v728 = vld [vmem:[%s613 + $0xda] sm:$0xff]
      %v729 = vld [vmem:[%s613 + $0xe2] sm:$0xff]
      %v730 = vld [vmem:[%s613 + $0xf2] sm:$0xff]
      %v731 = vld [vmem:[%s613 + $0xfa] sm:$0xff]
      %v732 = vld [vmem:[%s613 + $0x10a] sm:$0xff]
      %v733 = vld [vmem:[%s613 + $0x112] sm:$0xff]
      %v734 = vld [vmem:[%s613 + $0x122] sm:$0xff]
      %v735 = vld [vmem:[%s613 + $0x12a] sm:$0xff]
      %v736 = vld [vmem:[%s613 + $0x13a] sm:$0xff]
      %v737 = vld [vmem:[%s613 + $0x142] sm:$0xff]
      %v738 = vld [vmem:[%s613 + $0x152] sm:$0xff]
      %v739 = vld [vmem:[%s613 + $0x15a] sm:$0xff]
      %v740 = vld [vmem:[%s613 + $0x16a] sm:$0xff]
      %v741 = vld [vmem:[%s613 + $0x172] sm:$0xff]
      %v742 = vpack.c.bf16 %v711, %v710
      %v743 = vpack.c.bf16 %v713, %v712
      %v744 = vpack.c.bf16 %v715, %v714
      %v745 = vpack.c.bf16 %v717, %v716
      %v746 = vpack.c.bf16 %v719, %v718
      %v747 = vpack.c.bf16 %v721, %v720
      %v748 = vpack.c.bf16 %v723, %v722
      %v749 = vpack.c.bf16 %v725, %v724
      %v750 = vpack.c.bf16 %v727, %v726
      %v751 = vpack.c.bf16 %v729, %v728
      %v752 = vpack.c.bf16 %v731, %v730
      %v753 = vpack.c.bf16 %v733, %v732
      %v754 = vpack.c.bf16 %v735, %v734
      %v755 = vpack.c.bf16 %v737, %v736
      %v756 = vpack.c.bf16 %v739, %v738
      %v757 = vpack.c.bf16 %v741, %v740
      %774 = vrot.lane.b32.xlu0 %v501, 4
      %v775 = vpop.permute.xlu0 %774
      %776 = vrot.lane.b32.xlu0 %v502, 4
      %v777 = vpop.permute.xlu0 %776
      %778 = vrot.lane.b32.xlu0 %v503, 4
      %v779 = vpop.permute.xlu0 %778
      %780 = vrot.lane.b32.xlu0 %v504, 4
      %v781 = vpop.permute.xlu0 %780
      %782 = vrot.lane.b32.xlu0 %v505, 4
      %v783 = vpop.permute.xlu0 %782
      %784 = vrot.lane.b32.xlu0 %v506, 4
      %v785 = vpop.permute.xlu0 %784
      %786 = vrot.lane.b32.xlu0 %v507, 4
      %v787 = vpop.permute.xlu0 %786
      %788 = vrot.lane.b32.xlu0 %v508, 4
      %v789 = vpop.permute.xlu0 %788
      %790 = vrot.lane.b32.xlu0 %v509, 4
      %v791 = vpop.permute.xlu0 %790
      %792 = vrot.lane.b32.xlu0 %v510, 4
      %v793 = vpop.permute.xlu0 %792
      %794 = vrot.lane.b32.xlu0 %v511, 4
      %v795 = vpop.permute.xlu0 %794
      %796 = vrot.lane.b32.xlu0 %v512, 4
      %v797 = vpop.permute.xlu0 %796
      %798 = vrot.lane.b32.xlu0 %v513, 4
      %v799 = vpop.permute.xlu0 %798
      %800 = vrot.lane.b32.xlu0 %v514, 4
      %v801 = vpop.permute.xlu0 %800
      %802 = vrot.lane.b32.xlu0 %v515, 4
      %v803 = vpop.permute.xlu0 %802
      %804 = vrot.lane.b32.xlu0 %v516, 4
      %v805 = vpop.permute.xlu0 %804
      %822 = vrot.lane.b32.xlu0 %v405, 8
      %v823 = vpop.permute.xlu0 %822
      %824 = vrot.lane.b32.xlu0 %v406, 8
      %v825 = vpop.permute.xlu0 %824
      %826 = vrot.lane.b32.xlu0 %v407, 8
      %v827 = vpop.permute.xlu0 %826
      %828 = vrot.lane.b32.xlu0 %v408, 8
      %v829 = vpop.permute.xlu0 %828
      %830 = vrot.lane.b32.xlu0 %v409, 8
      %v831 = vpop.permute.xlu0 %830
      %832 = vrot.lane.b32.xlu0 %v410, 8
      %v833 = vpop.permute.xlu0 %832
      %834 = vrot.lane.b32.xlu0 %v411, 8
      %v835 = vpop.permute.xlu0 %834
      %836 = vrot.lane.b32.xlu0 %v412, 8
      %v837 = vpop.permute.xlu0 %836
      %838 = vrot.lane.b32.xlu0 %v413, 8
      %v839 = vpop.permute.xlu0 %838
      %840 = vrot.lane.b32.xlu0 %v414, 8
      %v841 = vpop.permute.xlu0 %840
      %842 = vrot.lane.b32.xlu0 %v415, 8
      %v843 = vpop.permute.xlu0 %842
      %844 = vrot.lane.b32.xlu0 %v416, 8
      %v845 = vpop.permute.xlu0 %844
      %846 = vrot.lane.b32.xlu0 %v417, 8
      %v847 = vpop.permute.xlu0 %846
      %848 = vrot.lane.b32.xlu0 %v418, 8
      %v849 = vpop.permute.xlu0 %848
      %850 = vrot.lane.b32.xlu0 %v419, 8
      %v851 = vpop.permute.xlu0 %850
      %852 = vrot.lane.b32.xlu0 %v420, 8
      %v853 = vpop.permute.xlu0 %852
      %870 = vrot.lane.b32.xlu0 %v357, 12
      %v871 = vpop.permute.xlu0 %870
      %872 = vrot.lane.b32.xlu0 %v358, 12
      %v873 = vpop.permute.xlu0 %872
      %874 = vrot.lane.b32.xlu0 %v359, 12
      %v875 = vpop.permute.xlu0 %874
      %876 = vrot.lane.b32.xlu0 %v360, 12
      %v877 = vpop.permute.xlu0 %876
      %878 = vrot.lane.b32.xlu0 %v361, 12
      %v879 = vpop.permute.xlu0 %878
      %880 = vrot.lane.b32.xlu0 %v362, 12
      %v881 = vpop.permute.xlu0 %880
      %882 = vrot.lane.b32.xlu0 %v363, 12
      %v883 = vpop.permute.xlu0 %882
      %884 = vrot.lane.b32.xlu0 %v364, 12
      %v885 = vpop.permute.xlu0 %884
      %886 = vrot.lane.b32.xlu0 %v365, 12
      %v887 = vpop.permute.xlu0 %886
      %888 = vrot.lane.b32.xlu0 %v366, 12
      %v889 = vpop.permute.xlu0 %888
      %890 = vrot.lane.b32.xlu0 %v367, 12
      %v891 = vpop.permute.xlu0 %890
      %892 = vrot.lane.b32.xlu0 %v368, 12
      %v893 = vpop.permute.xlu0 %892
      %894 = vrot.lane.b32.xlu0 %v369, 12
      %v895 = vpop.permute.xlu0 %894
      %896 = vrot.lane.b32.xlu0 %v370, 12
      %v897 = vpop.permute.xlu0 %896
      %898 = vrot.lane.b32.xlu0 %v371, 12
      %v899 = vpop.permute.xlu0 %898
      %900 = vrot.lane.b32.xlu0 %v372, 12
      %v901 = vpop.permute.xlu0 %900
      %v904 = vsel %vm172, %v549, %v775
      %v907 = vsel %vm172, %v550, %v777
      %v910 = vsel %vm172, %v551, %v779
      %v913 = vsel %vm172, %v552, %v781
      %v916 = vsel %vm172, %v553, %v783
      %v919 = vsel %vm172, %v554, %v785
      %v922 = vsel %vm172, %v555, %v787
      %v925 = vsel %vm172, %v556, %v789
      %v928 = vsel %vm172, %v557, %v791
      %v931 = vsel %vm172, %v558, %v793
      %v934 = vsel %vm172, %v559, %v795
      %v937 = vsel %vm172, %v560, %v797
      %v940 = vsel %vm172, %v561, %v799
      %v943 = vsel %vm172, %v562, %v801
      %v946 = vsel %vm172, %v563, %v803
      %v949 = vsel %vm172, %v564, %v805
      %vm950 = vcmask 64512
      %v952 = vsel %vm950, %v904, %v823
      %v954 = vsel %vm950, %v907, %v825
      %v956 = vsel %vm950, %v910, %v827
      %v958 = vsel %vm950, %v913, %v829
      %v960 = vsel %vm950, %v916, %v831
      %v962 = vsel %vm950, %v919, %v833
      %v964 = vsel %vm950, %v922, %v835
      %v966 = vsel %vm950, %v925, %v837
      %v968 = vsel %vm950, %v928, %v839
      %v970 = vsel %vm950, %v931, %v841
      %v972 = vsel %vm950, %v934, %v843
      %v974 = vsel %vm950, %v937, %v845
      %v976 = vsel %vm950, %v940, %v847
      %v978 = vsel %vm950, %v943, %v849
      %v980 = vsel %vm950, %v946, %v851
      %v982 = vsel %vm950, %v949, %v853
      %vm983 = vcmask 97280
      %v985 = vsel %vm983, %v952, %v871
      %v987 = vsel %vm983, %v954, %v873
      %v989 = vsel %vm983, %v956, %v875
      %v991 = vsel %vm983, %v958, %v877
      %v993 = vsel %vm983, %v960, %v879
      %v995 = vsel %vm983, %v962, %v881
      %v997 = vsel %vm983, %v964, %v883
      %v999 = vsel %vm983, %v966, %v885
      %v1001 = vsel %vm983, %v968, %v887
      %v1003 = vsel %vm983, %v970, %v889
      %v1005 = vsel %vm983, %v972, %v891
      %v1007 = vsel %vm983, %v974, %v893
      %v1009 = vsel %vm983, %v976, %v895
      %v1011 = vsel %vm983, %v978, %v897
      %v1013 = vsel %vm983, %v980, %v899
      %v1015 = vsel %vm983, %v982, %v901
      %v1016 = vld [vmem:[%s1] sm:$0xf]
      %v1017 = vld [vmem:[%s1 + $0x4] sm:$0xf]
      %v1020 = vunpack.c.l.b16 %v1016
      %v1021 = vunpack.c.l.b16 %v1017
      %v1022 = vpack.c.b16 %v1021, %v1020
      %vm1024 = vcmask 130048
      %v1025 = vsel %vm1024, %v985, 0
      %v1027 = vsel %vm1024, %v987, 0
      %v1029 = vsel %vm1024, %v989, 0
      %v1031 = vsel %vm1024, %v991, 0
      %v1033 = vsel %vm1024, %v993, 0
      %v1035 = vsel %vm1024, %v995, 0
      %v1037 = vsel %vm1024, %v997, 0
      %v1039 = vsel %vm1024, %v999, 0
      %v1041 = vsel %vm1024, %v1001, 0
      %v1043 = vsel %vm1024, %v1003, 0
      %v1045 = vsel %vm1024, %v1005, 0
      %v1047 = vsel %vm1024, %v1007, 0
      %v1049 = vsel %vm1024, %v1009, 0
      %v1051 = vsel %vm1024, %v1011, 0
      %v1053 = vsel %vm1024, %v1013, 0
      %v1055 = vsel %vm1024, %v1015, 0
      %1057 = vmatprep.subr.bf16.mxu0 0
      %1058 = vmatpush1.bf16.msra.mxu0 0
      %1059 = vmatprep.subr.bf16.mxu0 0
      %1060 = vmatpush1.bf16.msra.mxu0 0
      %1061 = vmatprep.subr.bf16.mxu0 0
      %1062 = vmatpush1.bf16.msra.mxu0 0
      %1063 = vmatprep.subr.bf16.mxu0 0
      %1064 = vmatpush1.bf16.msra.mxu0 0
      %1065 = vmatprep.subr.bf16.mxu0 0
      %1066 = vmatpush1.bf16.msra.mxu0 0
      %1067 = vmatprep.subr.bf16.mxu0 0
      %1068 = vmatpush1.bf16.msra.mxu0 0
      %1069 = vmatprep.subr.bf16.mxu0 0
      %1070 = vmatpush1.bf16.msra.mxu0 0
      %1071 = vmatprep.subr.bf16.mxu0 0
      %1072 = vmatpush1.bf16.msra.mxu0 %v1022
      %1073 = vmatprep.subr.bf16.mxu0 0
      %1074 = vmatpush2.bf16.msra.mxu0 0
      %1075 = vmatprep.subr.bf16.mxu0 0
      %1076 = vmatpush2.bf16.msra.mxu0 0
      %1077 = vmatprep.subr.bf16.mxu0 0
      %1078 = vmatpush2.bf16.msra.mxu0 0
      %1079 = vmatprep.subr.bf16.mxu0 0
      %1080 = vmatpush2.bf16.msra.mxu0 0
      %1081 = vmatprep.subr.bf16.mxu0 0
      %1082 = vmatpush2.bf16.msra.mxu0 0
      %1083 = vmatprep.subr.bf16.mxu0 0
      %1084 = vmatpush2.bf16.msra.mxu0 0
      %1085 = vmatprep.subr.bf16.mxu0 0
      %1086 = vmatpush2.bf16.msra.mxu0 0
      %1087 = vmatprep.subr.bf16.mxu0 0
      %1088 = vmatpush2.bf16.msra.mxu0 0
      %1089 = vmatprep.mubr.bf16.mxu0 0
      %1090 = vmatmul.mubr.bf16.gmra.mxu0 %v1025
      %v1091 = vpop.f32.mrf.mxu0
      %v1092 = vadd.f32 0.0, %v1091
      %v1093 = vpop.f32.mrf.mxu0
      %v1094 = vpop.f32.mrf.mxu0
      %v1095 = vadd.f32 0.0, %v1094
      %v1096 = vpop.f32.mrf.mxu0
      %1097 = vmatprep.mubr.bf16.mxu0 0
      %1098 = vmatmul.mubr.bf16.gmra.mxu0 %v1027
      %v1099 = vpop.f32.mrf.mxu0
      %v1100 = vadd.f32 0.0, %v1099
      %v1101 = vpop.f32.mrf.mxu0
      %v1102 = vpop.f32.mrf.mxu0
      %v1103 = vadd.f32 0.0, %v1102
      %v1104 = vpop.f32.mrf.mxu0
      %1105 = vmatprep.mubr.bf16.mxu0 0
      %1106 = vmatmul.mubr.bf16.gmra.mxu0 %v1029
      %v1107 = vpop.f32.mrf.mxu0
      %v1108 = vadd.f32 0.0, %v1107
      %v1109 = vpop.f32.mrf.mxu0
      %v1110 = vpop.f32.mrf.mxu0
      %v1111 = vadd.f32 0.0, %v1110
      %v1112 = vpop.f32.mrf.mxu0
      %1113 = vmatprep.mubr.bf16.mxu0 0
      %1114 = vmatmul.mubr.bf16.gmra.mxu0 %v1031
      %v1115 = vpop.f32.mrf.mxu0
      %v1116 = vadd.f32 0.0, %v1115
      %v1117 = vpop.f32.mrf.mxu0
      %v1118 = vpop.f32.mrf.mxu0
      %v1119 = vadd.f32 0.0, %v1118
      %v1120 = vpop.f32.mrf.mxu0
      %1121 = vmatprep.mubr.bf16.mxu0 0
      %1122 = vmatmul.mubr.bf16.gmra.mxu0 %v1033
      %v1123 = vpop.f32.mrf.mxu0
      %v1124 = vadd.f32 0.0, %v1123
      %v1125 = vpop.f32.mrf.mxu0
      %v1126 = vpop.f32.mrf.mxu0
      %v1127 = vadd.f32 0.0, %v1126
      %v1128 = vpop.f32.mrf.mxu0
      %1129 = vmatprep.mubr.bf16.mxu0 0
      %1130 = vmatmul.mubr.bf16.gmra.mxu0 %v1035
      %v1131 = vpop.f32.mrf.mxu0
      %v1132 = vadd.f32 0.0, %v1131
      %v1133 = vpop.f32.mrf.mxu0
      %v1134 = vpop.f32.mrf.mxu0
      %v1135 = vadd.f32 0.0, %v1134
      %v1136 = vpop.f32.mrf.mxu0
      %1137 = vmatprep.mubr.bf16.mxu0 0
      %1138 = vmatmul.mubr.bf16.gmra.mxu0 %v1037
      %v1139 = vpop.f32.mrf.mxu0
      %v1140 = vadd.f32 0.0, %v1139
      %v1141 = vpop.f32.mrf.mxu0
      %v1142 = vpop.f32.mrf.mxu0
      %v1143 = vadd.f32 0.0, %v1142
      %v1144 = vpop.f32.mrf.mxu0
      %1145 = vmatprep.mubr.bf16.mxu0 0
      %1146 = vmatmul.mubr.bf16.gmra.mxu0 %v1039
      %v1147 = vpop.f32.mrf.mxu0
      %v1148 = vadd.f32 0.0, %v1147
      %v1149 = vpop.f32.mrf.mxu0
      %v1150 = vpop.f32.mrf.mxu0
      %v1151 = vadd.f32 0.0, %v1150
      %v1152 = vpop.f32.mrf.mxu0
      %1153 = vmatprep.mubr.bf16.mxu0 0
      %1154 = vmatmul.mubr.bf16.gmra.mxu0 %v1041
      %v1155 = vpop.f32.mrf.mxu0
      %v1156 = vadd.f32 0.0, %v1155
      %v1157 = vpop.f32.mrf.mxu0
      %v1158 = vpop.f32.mrf.mxu0
      %v1159 = vadd.f32 0.0, %v1158
      %v1160 = vpop.f32.mrf.mxu0
      %1161 = vmatprep.mubr.bf16.mxu0 0
      %1162 = vmatmul.mubr.bf16.gmra.mxu0 %v1043
      %v1163 = vpop.f32.mrf.mxu0
      %v1164 = vadd.f32 0.0, %v1163
      %v1165 = vpop.f32.mrf.mxu0
      %v1166 = vpop.f32.mrf.mxu0
      %v1167 = vadd.f32 0.0, %v1166
      %v1168 = vpop.f32.mrf.mxu0
      %1169 = vmatprep.mubr.bf16.mxu0 0
      %1170 = vmatmul.mubr.bf16.gmra.mxu0 %v1045
      %v1171 = vpop.f32.mrf.mxu0
      %v1172 = vadd.f32 0.0, %v1171
      %v1173 = vpop.f32.mrf.mxu0
      %v1174 = vpop.f32.mrf.mxu0
      %v1175 = vadd.f32 0.0, %v1174
      %v1176 = vpop.f32.mrf.mxu0
      %1177 = vmatprep.mubr.bf16.mxu0 0
      %1178 = vmatmul.mubr.bf16.gmra.mxu0 %v1047
      %v1179 = vpop.f32.mrf.mxu0
      %v1180 = vadd.f32 0.0, %v1179
      %v1181 = vpop.f32.mrf.mxu0
      %v1182 = vpop.f32.mrf.mxu0
      %v1183 = vadd.f32 0.0, %v1182
      %v1184 = vpop.f32.mrf.mxu0
      %1185 = vmatprep.mubr.bf16.mxu0 0
      %1186 = vmatmul.mubr.bf16.gmra.mxu0 %v1049
      %v1187 = vpop.f32.mrf.mxu0
      %v1188 = vadd.f32 0.0, %v1187
      %v1189 = vpop.f32.mrf.mxu0
      %v1190 = vpop.f32.mrf.mxu0
      %v1191 = vadd.f32 0.0, %v1190
      %v1192 = vpop.f32.mrf.mxu0
      %1193 = vmatprep.mubr.bf16.mxu0 0
      %1194 = vmatmul.mubr.bf16.gmra.mxu0 %v1051
      %v1195 = vpop.f32.mrf.mxu0
      %v1196 = vadd.f32 0.0, %v1195
      %v1197 = vpop.f32.mrf.mxu0
      %v1198 = vpop.f32.mrf.mxu0
      %v1199 = vadd.f32 0.0, %v1198
      %v1200 = vpop.f32.mrf.mxu0
      %1201 = vmatprep.mubr.bf16.mxu0 0
      %1202 = vmatmul.mubr.bf16.gmra.mxu0 %v1053
      %v1203 = vpop.f32.mrf.mxu0
      %v1204 = vadd.f32 0.0, %v1203
      %v1205 = vpop.f32.mrf.mxu0
      %v1206 = vpop.f32.mrf.mxu0
      %v1207 = vadd.f32 0.0, %v1206
      %v1208 = vpop.f32.mrf.mxu0
      %1209 = vmatprep.mubr.bf16.mxu0 0
      %1210 = vmatmul.mubr.bf16.gmra.mxu0 %v1055
      %v1211 = vpop.f32.mrf.mxu0
      %v1212 = vadd.f32 0.0, %v1211
      %v1213 = vpop.f32.mrf.mxu0
      %v1214 = vpop.f32.mrf.mxu0
      %v1215 = vadd.f32 0.0, %v1214
      %v1216 = vpop.f32.mrf.mxu0
      %1217 = vdwg.mxu0
      %1234 = vrot.lane.b32.xlu0 %v549, 4
      %v1235 = vpop.permute.xlu0 %1234
      %1236 = vrot.lane.b32.xlu0 %v550, 4
      %v1237 = vpop.permute.xlu0 %1236
      %1238 = vrot.lane.b32.xlu0 %v551, 4
      %v1239 = vpop.permute.xlu0 %1238
      %1240 = vrot.lane.b32.xlu0 %v552, 4
      %v1241 = vpop.permute.xlu0 %1240
      %1242 = vrot.lane.b32.xlu0 %v553, 4
      %v1243 = vpop.permute.xlu0 %1242
      %1244 = vrot.lane.b32.xlu0 %v554, 4
      %v1245 = vpop.permute.xlu0 %1244
      %1246 = vrot.lane.b32.xlu0 %v555, 4
      %v1247 = vpop.permute.xlu0 %1246
      %1248 = vrot.lane.b32.xlu0 %v556, 4
      %v1249 = vpop.permute.xlu0 %1248
      %1250 = vrot.lane.b32.xlu0 %v557, 4
      %v1251 = vpop.permute.xlu0 %1250
      %1252 = vrot.lane.b32.xlu0 %v558, 4
      %v1253 = vpop.permute.xlu0 %1252
      %1254 = vrot.lane.b32.xlu0 %v559, 4
      %v1255 = vpop.permute.xlu0 %1254
      %1256 = vrot.lane.b32.xlu0 %v560, 4
      %v1257 = vpop.permute.xlu0 %1256
      %1258 = vrot.lane.b32.xlu0 %v561, 4
      %v1259 = vpop.permute.xlu0 %1258
      %1260 = vrot.lane.b32.xlu0 %v562, 4
      %v1261 = vpop.permute.xlu0 %1260
      %1262 = vrot.lane.b32.xlu0 %v563, 4
      %v1263 = vpop.permute.xlu0 %1262
      %1264 = vrot.lane.b32.xlu0 %v564, 4
      %v1265 = vpop.permute.xlu0 %1264
      %1282 = vrot.lane.b32.xlu0 %v453, 8
      %v1283 = vpop.permute.xlu0 %1282
      %1284 = vrot.lane.b32.xlu0 %v454, 8
      %v1285 = vpop.permute.xlu0 %1284
      %1286 = vrot.lane.b32.xlu0 %v455, 8
      %v1287 = vpop.permute.xlu0 %1286
      %1288 = vrot.lane.b32.xlu0 %v456, 8
      %v1289 = vpop.permute.xlu0 %1288
      %1290 = vrot.lane.b32.xlu0 %v457, 8
      %v1291 = vpop.permute.xlu0 %1290
      %1292 = vrot.lane.b32.xlu0 %v458, 8
      %v1293 = vpop.permute.xlu0 %1292
      %1294 = vrot.lane.b32.xlu0 %v459, 8
      %v1295 = vpop.permute.xlu0 %1294
      %1296 = vrot.lane.b32.xlu0 %v460, 8
      %v1297 = vpop.permute.xlu0 %1296
      %1298 = vrot.lane.b32.xlu0 %v461, 8
      %v1299 = vpop.permute.xlu0 %1298
      %1300 = vrot.lane.b32.xlu0 %v462, 8
      %v1301 = vpop.permute.xlu0 %1300
      %1302 = vrot.lane.b32.xlu0 %v463, 8
      %v1303 = vpop.permute.xlu0 %1302
      %1304 = vrot.lane.b32.xlu0 %v464, 8
      %v1305 = vpop.permute.xlu0 %1304
      %1306 = vrot.lane.b32.xlu0 %v465, 8
      %v1307 = vpop.permute.xlu0 %1306
      %1308 = vrot.lane.b32.xlu0 %v466, 8
      %v1309 = vpop.permute.xlu0 %1308
      %1310 = vrot.lane.b32.xlu0 %v467, 8
      %v1311 = vpop.permute.xlu0 %1310
      %1312 = vrot.lane.b32.xlu0 %v468, 8
      %v1313 = vpop.permute.xlu0 %1312
      %1314 = vrot.lane.b32.xlu0 %v405, 12
      %v1315 = vpop.permute.xlu0 %1314
      %1316 = vrot.lane.b32.xlu0 %v406, 12
      %v1317 = vpop.permute.xlu0 %1316
      %1318 = vrot.lane.b32.xlu0 %v407, 12
      %v1319 = vpop.permute.xlu0 %1318
      %1320 = vrot.lane.b32.xlu0 %v408, 12
      %v1321 = vpop.permute.xlu0 %1320
      %1322 = vrot.lane.b32.xlu0 %v409, 12
      %v1323 = vpop.permute.xlu0 %1322
      %1324 = vrot.lane.b32.xlu0 %v410, 12
      %v1325 = vpop.permute.xlu0 %1324
      %1326 = vrot.lane.b32.xlu0 %v411, 12
      %v1327 = vpop.permute.xlu0 %1326
      %1328 = vrot.lane.b32.xlu0 %v412, 12
      %v1329 = vpop.permute.xlu0 %1328
      %1330 = vrot.lane.b32.xlu0 %v413, 12
      %v1331 = vpop.permute.xlu0 %1330
      %1332 = vrot.lane.b32.xlu0 %v414, 12
      %v1333 = vpop.permute.xlu0 %1332
      %1334 = vrot.lane.b32.xlu0 %v415, 12
      %v1335 = vpop.permute.xlu0 %1334
      %1336 = vrot.lane.b32.xlu0 %v416, 12
      %v1337 = vpop.permute.xlu0 %1336
      %1338 = vrot.lane.b32.xlu0 %v417, 12
      %v1339 = vpop.permute.xlu0 %1338
      %1340 = vrot.lane.b32.xlu0 %v418, 12
      %v1341 = vpop.permute.xlu0 %1340
      %1342 = vrot.lane.b32.xlu0 %v419, 12
      %v1343 = vpop.permute.xlu0 %1342
      %1344 = vrot.lane.b32.xlu0 %v420, 12
      %v1345 = vpop.permute.xlu0 %1344
      %v1348 = vsel %vm172, %v597, %v1235
      %v1351 = vsel %vm172, %v598, %v1237
      %v1354 = vsel %vm172, %v599, %v1239
      %v1357 = vsel %vm172, %v600, %v1241
      %v1360 = vsel %vm172, %v601, %v1243
      %v1363 = vsel %vm172, %v602, %v1245
      %v1366 = vsel %vm172, %v603, %v1247
      %v1369 = vsel %vm172, %v604, %v1249
      %v1372 = vsel %vm172, %v605, %v1251
      %v1375 = vsel %vm172, %v606, %v1253
      %v1378 = vsel %vm172, %v607, %v1255
      %v1381 = vsel %vm172, %v608, %v1257
      %v1384 = vsel %vm172, %v609, %v1259
      %v1387 = vsel %vm172, %v610, %v1261
      %v1390 = vsel %vm172, %v611, %v1263
      %v1393 = vsel %vm172, %v612, %v1265
      %v1395 = vsel %vm950, %v1348, %v1283
      %v1397 = vsel %vm950, %v1351, %v1285
      %v1399 = vsel %vm950, %v1354, %v1287
      %v1401 = vsel %vm950, %v1357, %v1289
      %v1403 = vsel %vm950, %v1360, %v1291
      %v1405 = vsel %vm950, %v1363, %v1293
      %v1407 = vsel %vm950, %v1366, %v1295
      %v1409 = vsel %vm950, %v1369, %v1297
      %v1411 = vsel %vm950, %v1372, %v1299
      %v1413 = vsel %vm950, %v1375, %v1301
      %v1415 = vsel %vm950, %v1378, %v1303
      %v1417 = vsel %vm950, %v1381, %v1305
      %v1419 = vsel %vm950, %v1384, %v1307
      %v1421 = vsel %vm950, %v1387, %v1309
      %v1423 = vsel %vm950, %v1390, %v1311
      %v1425 = vsel %vm950, %v1393, %v1313
      %v1427 = vsel %vm983, %v1395, %v1315
      %v1429 = vsel %vm983, %v1397, %v1317
      %v1431 = vsel %vm983, %v1399, %v1319
      %v1433 = vsel %vm983, %v1401, %v1321
      %v1435 = vsel %vm983, %v1403, %v1323
      %v1437 = vsel %vm983, %v1405, %v1325
      %v1439 = vsel %vm983, %v1407, %v1327
      %v1441 = vsel %vm983, %v1409, %v1329
      %v1443 = vsel %vm983, %v1411, %v1331
      %v1445 = vsel %vm983, %v1413, %v1333
      %v1447 = vsel %vm983, %v1415, %v1335
      %v1449 = vsel %vm983, %v1417, %v1337
      %v1451 = vsel %vm983, %v1419, %v1339
      %v1453 = vsel %vm983, %v1421, %v1341
      %v1455 = vsel %vm983, %v1423, %v1343
      %v1457 = vsel %vm983, %v1425, %v1345
      %s1458 = scalar_lea.vmem %s1, 8
      %v1459 = vld [vmem:[%s1458] sm:$0xf]
      %v1460 = vld [vmem:[%s1458 + $0x4] sm:$0xf]
      %v1463 = vunpack.c.l.b16 %v1459
      %v1464 = vunpack.c.l.b16 %v1460
      %v1465 = vpack.c.b16 %v1464, %v1463
      %v1467 = vsel %vm1024, %v1427, 0
      %v1469 = vsel %vm1024, %v1429, 0
      %v1471 = vsel %vm1024, %v1431, 0
      %v1473 = vsel %vm1024, %v1433, 0
      %v1475 = vsel %vm1024, %v1435, 0
      %v1477 = vsel %vm1024, %v1437, 0
      %v1479 = vsel %vm1024, %v1439, 0
      %v1481 = vsel %vm1024, %v1441, 0
      %v1483 = vsel %vm1024, %v1443, 0
      %v1485 = vsel %vm1024, %v1445, 0
      %v1487 = vsel %vm1024, %v1447, 0
      %v1489 = vsel %vm1024, %v1449, 0
      %v1491 = vsel %vm1024, %v1451, 0
      %v1493 = vsel %vm1024, %v1453, 0
      %v1495 = vsel %vm1024, %v1455, 0
      %v1497 = vsel %vm1024, %v1457, 0
      %1499 = vmatprep.subr.bf16.mxu0 0
      %1500 = vmatpush1.bf16.msra.mxu0 0
      %1501 = vmatprep.subr.bf16.mxu0 0
      %1502 = vmatpush1.bf16.msra.mxu0 0
      %1503 = vmatprep.subr.bf16.mxu0 0
      %1504 = vmatpush1.bf16.msra.mxu0 0
      %1505 = vmatprep.subr.bf16.mxu0 0
      %1506 = vmatpush1.bf16.msra.mxu0 0
      %1507 = vmatprep.subr.bf16.mxu0 0
      %1508 = vmatpush1.bf16.msra.mxu0 0
      %1509 = vmatprep.subr.bf16.mxu0 0
      %1510 = vmatpush1.bf16.msra.mxu0 0
      %1511 = vmatprep.subr.bf16.mxu0 0
      %1512 = vmatpush1.bf16.msra.mxu0 0
      %1513 = vmatprep.subr.bf16.mxu0 0
      %1514 = vmatpush1.bf16.msra.mxu0 %v1465
      %1515 = vmatprep.subr.bf16.mxu0 0
      %1516 = vmatpush2.bf16.msra.mxu0 0
      %1517 = vmatprep.subr.bf16.mxu0 0
      %1518 = vmatpush2.bf16.msra.mxu0 0
      %1519 = vmatprep.subr.bf16.mxu0 0
      %1520 = vmatpush2.bf16.msra.mxu0 0
      %1521 = vmatprep.subr.bf16.mxu0 0
      %1522 = vmatpush2.bf16.msra.mxu0 0
      %1523 = vmatprep.subr.bf16.mxu0 0
      %1524 = vmatpush2.bf16.msra.mxu0 0
      %1525 = vmatprep.subr.bf16.mxu0 0
      %1526 = vmatpush2.bf16.msra.mxu0 0
      %1527 = vmatprep.subr.bf16.mxu0 0
      %1528 = vmatpush2.bf16.msra.mxu0 0
      %1529 = vmatprep.subr.bf16.mxu0 0
      %1530 = vmatpush2.bf16.msra.mxu0 0
      %1531 = vmatprep.mubr.bf16.mxu0 0
      %1532 = vmatmul.mubr.bf16.gmra.mxu0 %v1467
      %v1533 = vpop.f32.mrf.mxu0
      %v1534 = vadd.f32 0.0, %v1533
      %v1535 = vpop.f32.mrf.mxu0
      %v1536 = vpop.f32.mrf.mxu0
      %v1537 = vadd.f32 0.0, %v1536
      %v1538 = vpop.f32.mrf.mxu0
      %1539 = vmatprep.mubr.bf16.mxu0 0
      %1540 = vmatmul.mubr.bf16.gmra.mxu0 %v1469
      %v1541 = vpop.f32.mrf.mxu0
      %v1542 = vadd.f32 0.0, %v1541
      %v1543 = vpop.f32.mrf.mxu0
      %v1544 = vpop.f32.mrf.mxu0
      %v1545 = vadd.f32 0.0, %v1544
      %v1546 = vpop.f32.mrf.mxu0
      %1547 = vmatprep.mubr.bf16.mxu0 0
      %1548 = vmatmul.mubr.bf16.gmra.mxu0 %v1471
      %v1549 = vpop.f32.mrf.mxu0
      %v1550 = vadd.f32 0.0, %v1549
      %v1551 = vpop.f32.mrf.mxu0
      %v1552 = vpop.f32.mrf.mxu0
      %v1553 = vadd.f32 0.0, %v1552
      %v1554 = vpop.f32.mrf.mxu0
      %1555 = vmatprep.mubr.bf16.mxu0 0
      %1556 = vmatmul.mubr.bf16.gmra.mxu0 %v1473
      %v1557 = vpop.f32.mrf.mxu0
      %v1558 = vadd.f32 0.0, %v1557
      %v1559 = vpop.f32.mrf.mxu0
      %v1560 = vpop.f32.mrf.mxu0
      %v1561 = vadd.f32 0.0, %v1560
      %v1562 = vpop.f32.mrf.mxu0
      %1563 = vmatprep.mubr.bf16.mxu0 0
      %1564 = vmatmul.mubr.bf16.gmra.mxu0 %v1475
      %v1565 = vpop.f32.mrf.mxu0
      %v1566 = vadd.f32 0.0, %v1565
      %v1567 = vpop.f32.mrf.mxu0
      %v1568 = vpop.f32.mrf.mxu0
      %v1569 = vadd.f32 0.0, %v1568
      %v1570 = vpop.f32.mrf.mxu0
      %1571 = vmatprep.mubr.bf16.mxu0 0
      %1572 = vmatmul.mubr.bf16.gmra.mxu0 %v1477
      %v1573 = vpop.f32.mrf.mxu0
      %v1574 = vadd.f32 0.0, %v1573
      %v1575 = vpop.f32.mrf.mxu0
      %v1576 = vpop.f32.mrf.mxu0
      %v1577 = vadd.f32 0.0, %v1576
      %v1578 = vpop.f32.mrf.mxu0
      %1579 = vmatprep.mubr.bf16.mxu0 0
      %1580 = vmatmul.mubr.bf16.gmra.mxu0 %v1479
      %v1581 = vpop.f32.mrf.mxu0
      %v1582 = vadd.f32 0.0, %v1581
      %v1583 = vpop.f32.mrf.mxu0
      %v1584 = vpop.f32.mrf.mxu0
      %v1585 = vadd.f32 0.0, %v1584
      %v1586 = vpop.f32.mrf.mxu0
      %1587 = vmatprep.mubr.bf16.mxu0 0
      %1588 = vmatmul.mubr.bf16.gmra.mxu0 %v1481
      %v1589 = vpop.f32.mrf.mxu0
      %v1590 = vadd.f32 0.0, %v1589
      %v1591 = vpop.f32.mrf.mxu0
      %v1592 = vpop.f32.mrf.mxu0
      %v1593 = vadd.f32 0.0, %v1592
      %v1594 = vpop.f32.mrf.mxu0
      %1595 = vmatprep.mubr.bf16.mxu0 0
      %1596 = vmatmul.mubr.bf16.gmra.mxu0 %v1483
      %v1597 = vpop.f32.mrf.mxu0
      %v1598 = vadd.f32 0.0, %v1597
      %v1599 = vpop.f32.mrf.mxu0
      %v1600 = vpop.f32.mrf.mxu0
      %v1601 = vadd.f32 0.0, %v1600
      %v1602 = vpop.f32.mrf.mxu0
      %1603 = vmatprep.mubr.bf16.mxu0 0
      %1604 = vmatmul.mubr.bf16.gmra.mxu0 %v1485
      %v1605 = vpop.f32.mrf.mxu0
      %v1606 = vadd.f32 0.0, %v1605
      %v1607 = vpop.f32.mrf.mxu0
      %v1608 = vpop.f32.mrf.mxu0
      %v1609 = vadd.f32 0.0, %v1608
      %v1610 = vpop.f32.mrf.mxu0
      %1611 = vmatprep.mubr.bf16.mxu0 0
      %1612 = vmatmul.mubr.bf16.gmra.mxu0 %v1487
      %v1613 = vpop.f32.mrf.mxu0
      %v1614 = vadd.f32 0.0, %v1613
      %v1615 = vpop.f32.mrf.mxu0
      %v1616 = vpop.f32.mrf.mxu0
      %v1617 = vadd.f32 0.0, %v1616
      %v1618 = vpop.f32.mrf.mxu0
      %1619 = vmatprep.mubr.bf16.mxu0 0
      %1620 = vmatmul.mubr.bf16.gmra.mxu0 %v1489
      %v1621 = vpop.f32.mrf.mxu0
      %v1622 = vadd.f32 0.0, %v1621
      %v1623 = vpop.f32.mrf.mxu0
      %v1624 = vpop.f32.mrf.mxu0
      %v1625 = vadd.f32 0.0, %v1624
      %v1626 = vpop.f32.mrf.mxu0
      %1627 = vmatprep.mubr.bf16.mxu0 0
      %1628 = vmatmul.mubr.bf16.gmra.mxu0 %v1491
      %v1629 = vpop.f32.mrf.mxu0
      %v1630 = vadd.f32 0.0, %v1629
      %v1631 = vpop.f32.mrf.mxu0
      %v1632 = vpop.f32.mrf.mxu0
      %v1633 = vadd.f32 0.0, %v1632
      %v1634 = vpop.f32.mrf.mxu0
      %1635 = vmatprep.mubr.bf16.mxu0 0
      %1636 = vmatmul.mubr.bf16.gmra.mxu0 %v1493
      %v1637 = vpop.f32.mrf.mxu0
      %v1638 = vadd.f32 0.0, %v1637
      %v1639 = vpop.f32.mrf.mxu0
      %v1640 = vpop.f32.mrf.mxu0
      %v1641 = vadd.f32 0.0, %v1640
      %v1642 = vpop.f32.mrf.mxu0
      %1643 = vmatprep.mubr.bf16.mxu0 0
      %1644 = vmatmul.mubr.bf16.gmra.mxu0 %v1495
      %v1645 = vpop.f32.mrf.mxu0
      %v1646 = vadd.f32 0.0, %v1645
      %v1647 = vpop.f32.mrf.mxu0
      %v1648 = vpop.f32.mrf.mxu0
      %v1649 = vadd.f32 0.0, %v1648
      %v1650 = vpop.f32.mrf.mxu0
      %1651 = vmatprep.mubr.bf16.mxu0 0
      %1652 = vmatmul.mubr.bf16.gmra.mxu0 %v1497
      %v1653 = vpop.f32.mrf.mxu0
      %v1654 = vadd.f32 0.0, %v1653
      %v1655 = vpop.f32.mrf.mxu0
      %v1656 = vpop.f32.mrf.mxu0
      %v1657 = vadd.f32 0.0, %v1656
      %v1658 = vpop.f32.mrf.mxu0
      %1659 = vdwg.mxu0
      %1676 = vrot.lane.b32.xlu0 %v646, 4
      %v1677 = vpop.permute.xlu0 %1676
      %1678 = vrot.lane.b32.xlu0 %v647, 4
      %v1679 = vpop.permute.xlu0 %1678
      %1680 = vrot.lane.b32.xlu0 %v648, 4
      %v1681 = vpop.permute.xlu0 %1680
      %1682 = vrot.lane.b32.xlu0 %v649, 4
      %v1683 = vpop.permute.xlu0 %1682
      %1684 = vrot.lane.b32.xlu0 %v650, 4
      %v1685 = vpop.permute.xlu0 %1684
      %1686 = vrot.lane.b32.xlu0 %v651, 4
      %v1687 = vpop.permute.xlu0 %1686
      %1688 = vrot.lane.b32.xlu0 %v652, 4
      %v1689 = vpop.permute.xlu0 %1688
      %1690 = vrot.lane.b32.xlu0 %v653, 4
      %v1691 = vpop.permute.xlu0 %1690
      %1692 = vrot.lane.b32.xlu0 %v654, 4
      %v1693 = vpop.permute.xlu0 %1692
      %1694 = vrot.lane.b32.xlu0 %v655, 4
      %v1695 = vpop.permute.xlu0 %1694
      %1696 = vrot.lane.b32.xlu0 %v656, 4
      %v1697 = vpop.permute.xlu0 %1696
      %1698 = vrot.lane.b32.xlu0 %v657, 4
      %v1699 = vpop.permute.xlu0 %1698
      %1700 = vrot.lane.b32.xlu0 %v658, 4
      %v1701 = vpop.permute.xlu0 %1700
      %1702 = vrot.lane.b32.xlu0 %v659, 4
      %v1703 = vpop.permute.xlu0 %1702
      %1704 = vrot.lane.b32.xlu0 %v660, 4
      %v1705 = vpop.permute.xlu0 %1704
      %1706 = vrot.lane.b32.xlu0 %v661, 4
      %v1707 = vpop.permute.xlu0 %1706
      %1708 = vrot.lane.b32.xlu0 %v549, 8
      %v1709 = vpop.permute.xlu0 %1708
      %1710 = vrot.lane.b32.xlu0 %v550, 8
      %v1711 = vpop.permute.xlu0 %1710
      %1712 = vrot.lane.b32.xlu0 %v551, 8
      %v1713 = vpop.permute.xlu0 %1712
      %1714 = vrot.lane.b32.xlu0 %v552, 8
      %v1715 = vpop.permute.xlu0 %1714
      %1716 = vrot.lane.b32.xlu0 %v553, 8
      %v1717 = vpop.permute.xlu0 %1716
      %1718 = vrot.lane.b32.xlu0 %v554, 8
      %v1719 = vpop.permute.xlu0 %1718
      %1720 = vrot.lane.b32.xlu0 %v555, 8
      %v1721 = vpop.permute.xlu0 %1720
      %1722 = vrot.lane.b32.xlu0 %v556, 8
      %v1723 = vpop.permute.xlu0 %1722
      %1724 = vrot.lane.b32.xlu0 %v557, 8
      %v1725 = vpop.permute.xlu0 %1724
      %1726 = vrot.lane.b32.xlu0 %v558, 8
      %v1727 = vpop.permute.xlu0 %1726
      %1728 = vrot.lane.b32.xlu0 %v559, 8
      %v1729 = vpop.permute.xlu0 %1728
      %1730 = vrot.lane.b32.xlu0 %v560, 8
      %v1731 = vpop.permute.xlu0 %1730
      %1732 = vrot.lane.b32.xlu0 %v561, 8
      %v1733 = vpop.permute.xlu0 %1732
      %1734 = vrot.lane.b32.xlu0 %v562, 8
      %v1735 = vpop.permute.xlu0 %1734
      %1736 = vrot.lane.b32.xlu0 %v563, 8
      %v1737 = vpop.permute.xlu0 %1736
      %1738 = vrot.lane.b32.xlu0 %v564, 8
      %v1739 = vpop.permute.xlu0 %1738
      %1740 = vrot.lane.b32.xlu0 %v501, 12
      %v1741 = vpop.permute.xlu0 %1740
      %1742 = vrot.lane.b32.xlu0 %v502, 12
      %v1743 = vpop.permute.xlu0 %1742
      %1744 = vrot.lane.b32.xlu0 %v503, 12
      %v1745 = vpop.permute.xlu0 %1744
      %1746 = vrot.lane.b32.xlu0 %v504, 12
      %v1747 = vpop.permute.xlu0 %1746
      %1748 = vrot.lane.b32.xlu0 %v505, 12
      %v1749 = vpop.permute.xlu0 %1748
      %1750 = vrot.lane.b32.xlu0 %v506, 12
      %v1751 = vpop.permute.xlu0 %1750
      %1752 = vrot.lane.b32.xlu0 %v507, 12
      %v1753 = vpop.permute.xlu0 %1752
      %1754 = vrot.lane.b32.xlu0 %v508, 12
      %v1755 = vpop.permute.xlu0 %1754
      %1756 = vrot.lane.b32.xlu0 %v509, 12
      %v1757 = vpop.permute.xlu0 %1756
      %1758 = vrot.lane.b32.xlu0 %v510, 12
      %v1759 = vpop.permute.xlu0 %1758
      %1760 = vrot.lane.b32.xlu0 %v511, 12
      %v1761 = vpop.permute.xlu0 %1760
      %1762 = vrot.lane.b32.xlu0 %v512, 12
      %v1763 = vpop.permute.xlu0 %1762
      %1764 = vrot.lane.b32.xlu0 %v513, 12
      %v1765 = vpop.permute.xlu0 %1764
      %1766 = vrot.lane.b32.xlu0 %v514, 12
      %v1767 = vpop.permute.xlu0 %1766
      %1768 = vrot.lane.b32.xlu0 %v515, 12
      %v1769 = vpop.permute.xlu0 %1768
      %1770 = vrot.lane.b32.xlu0 %v516, 12
      %v1771 = vpop.permute.xlu0 %1770
      %v1774 = vsel %vm172, %v694, %v1677
      %v1777 = vsel %vm172, %v695, %v1679
      %v1780 = vsel %vm172, %v696, %v1681
      %v1783 = vsel %vm172, %v697, %v1683
      %v1786 = vsel %vm172, %v698, %v1685
      %v1789 = vsel %vm172, %v699, %v1687
      %v1792 = vsel %vm172, %v700, %v1689
      %v1795 = vsel %vm172, %v701, %v1691
      %v1798 = vsel %vm172, %v702, %v1693
      %v1801 = vsel %vm172, %v703, %v1695
      %v1804 = vsel %vm172, %v704, %v1697
      %v1807 = vsel %vm172, %v705, %v1699
      %v1810 = vsel %vm172, %v706, %v1701
      %v1813 = vsel %vm172, %v707, %v1703
      %v1816 = vsel %vm172, %v708, %v1705
      %v1819 = vsel %vm172, %v709, %v1707
      %v1821 = vsel %vm950, %v1774, %v1709
      %v1823 = vsel %vm950, %v1777, %v1711
      %v1825 = vsel %vm950, %v1780, %v1713
      %v1827 = vsel %vm950, %v1783, %v1715
      %v1829 = vsel %vm950, %v1786, %v1717
      %v1831 = vsel %vm950, %v1789, %v1719
      %v1833 = vsel %vm950, %v1792, %v1721
      %v1835 = vsel %vm950, %v1795, %v1723
      %v1837 = vsel %vm950, %v1798, %v1725
      %v1839 = vsel %vm950, %v1801, %v1727
      %v1841 = vsel %vm950, %v1804, %v1729
      %v1843 = vsel %vm950, %v1807, %v1731
      %v1845 = vsel %vm950, %v1810, %v1733
      %v1847 = vsel %vm950, %v1813, %v1735
      %v1849 = vsel %vm950, %v1816, %v1737
      %v1851 = vsel %vm950, %v1819, %v1739
      %v1853 = vsel %vm983, %v1821, %v1741
      %v1855 = vsel %vm983, %v1823, %v1743
      %v1857 = vsel %vm983, %v1825, %v1745
      %v1859 = vsel %vm983, %v1827, %v1747
      %v1861 = vsel %vm983, %v1829, %v1749
      %v1863 = vsel %vm983, %v1831, %v1751
      %v1865 = vsel %vm983, %v1833, %v1753
      %v1867 = vsel %vm983, %v1835, %v1755
      %v1869 = vsel %vm983, %v1837, %v1757
      %v1871 = vsel %vm983, %v1839, %v1759
      %v1873 = vsel %vm983, %v1841, %v1761
      %v1875 = vsel %vm983, %v1843, %v1763
      %v1877 = vsel %vm983, %v1845, %v1765
      %v1879 = vsel %vm983, %v1847, %v1767
      %v1881 = vsel %vm983, %v1849, %v1769
      %v1883 = vsel %vm983, %v1851, %v1771
      %s1884 = scalar_lea.vmem %s1, 16
      %v1885 = vld [vmem:[%s1884] sm:$0xf]
      %v1886 = vld [vmem:[%s1884 + $0x4] sm:$0xf]
      %v1889 = vunpack.c.l.b16 %v1885
      %v1890 = vunpack.c.l.b16 %v1886
      %v1891 = vpack.c.b16 %v1890, %v1889
      %v1893 = vsel %vm1024, %v1853, 0
      %v1895 = vsel %vm1024, %v1855, 0
      %v1897 = vsel %vm1024, %v1857, 0
      %v1899 = vsel %vm1024, %v1859, 0
      %v1901 = vsel %vm1024, %v1861, 0
      %v1903 = vsel %vm1024, %v1863, 0
      %v1905 = vsel %vm1024, %v1865, 0
      %v1907 = vsel %vm1024, %v1867, 0
      %v1909 = vsel %vm1024, %v1869, 0
      %v1911 = vsel %vm1024, %v1871, 0
      %v1913 = vsel %vm1024, %v1873, 0
      %v1915 = vsel %vm1024, %v1875, 0
      %v1917 = vsel %vm1024, %v1877, 0
      %v1919 = vsel %vm1024, %v1879, 0
      %v1921 = vsel %vm1024, %v1881, 0
      %v1923 = vsel %vm1024, %v1883, 0
      %1925 = vmatprep.subr.bf16.mxu0 0
      %1926 = vmatpush1.bf16.msra.mxu0 0
      %1927 = vmatprep.subr.bf16.mxu0 0
      %1928 = vmatpush1.bf16.msra.mxu0 0
      %1929 = vmatprep.subr.bf16.mxu0 0
      %1930 = vmatpush1.bf16.msra.mxu0 0
      %1931 = vmatprep.subr.bf16.mxu0 0
      %1932 = vmatpush1.bf16.msra.mxu0 0
      %1933 = vmatprep.subr.bf16.mxu0 0
      %1934 = vmatpush1.bf16.msra.mxu0 0
      %1935 = vmatprep.subr.bf16.mxu0 0
      %1936 = vmatpush1.bf16.msra.mxu0 0
      %1937 = vmatprep.subr.bf16.mxu0 0
      %1938 = vmatpush1.bf16.msra.mxu0 0
      %1939 = vmatprep.subr.bf16.mxu0 0
      %1940 = vmatpush1.bf16.msra.mxu0 %v1891
      %1941 = vmatprep.subr.bf16.mxu0 0
      %1942 = vmatpush2.bf16.msra.mxu0 0
      %1943 = vmatprep.subr.bf16.mxu0 0
      %1944 = vmatpush2.bf16.msra.mxu0 0
      %1945 = vmatprep.subr.bf16.mxu0 0
      %1946 = vmatpush2.bf16.msra.mxu0 0
      %1947 = vmatprep.subr.bf16.mxu0 0
      %1948 = vmatpush2.bf16.msra.mxu0 0
      %1949 = vmatprep.subr.bf16.mxu0 0
      %1950 = vmatpush2.bf16.msra.mxu0 0
      %1951 = vmatprep.subr.bf16.mxu0 0
      %1952 = vmatpush2.bf16.msra.mxu0 0
      %1953 = vmatprep.subr.bf16.mxu0 0
      %1954 = vmatpush2.bf16.msra.mxu0 0
      %1955 = vmatprep.subr.bf16.mxu0 0
      %1956 = vmatpush2.bf16.msra.mxu0 0
      %1957 = vmatprep.mubr.bf16.mxu0 0
      %1958 = vmatmul.mubr.bf16.gmra.mxu0 %v1893
      %v1959 = vpop.f32.mrf.mxu0
      %v1960 = vadd.f32 0.0, %v1959
      %v1961 = vpop.f32.mrf.mxu0
      %v1962 = vpop.f32.mrf.mxu0
      %v1963 = vadd.f32 0.0, %v1962
      %v1964 = vpop.f32.mrf.mxu0
      %1965 = vmatprep.mubr.bf16.mxu0 0
      %1966 = vmatmul.mubr.bf16.gmra.mxu0 %v1895
      %v1967 = vpop.f32.mrf.mxu0
      %v1968 = vadd.f32 0.0, %v1967
      %v1969 = vpop.f32.mrf.mxu0
      %v1970 = vpop.f32.mrf.mxu0
      %v1971 = vadd.f32 0.0, %v1970
      %v1972 = vpop.f32.mrf.mxu0
      %1973 = vmatprep.mubr.bf16.mxu0 0
      %1974 = vmatmul.mubr.bf16.gmra.mxu0 %v1897
      %v1975 = vpop.f32.mrf.mxu0
      %v1976 = vadd.f32 0.0, %v1975
      %v1977 = vpop.f32.mrf.mxu0
      %v1978 = vpop.f32.mrf.mxu0
      %v1979 = vadd.f32 0.0, %v1978
      %v1980 = vpop.f32.mrf.mxu0
      %1981 = vmatprep.mubr.bf16.mxu0 0
      %1982 = vmatmul.mubr.bf16.gmra.mxu0 %v1899
      %v1983 = vpop.f32.mrf.mxu0
      %v1984 = vadd.f32 0.0, %v1983
      %v1985 = vpop.f32.mrf.mxu0
      %v1986 = vpop.f32.mrf.mxu0
      %v1987 = vadd.f32 0.0, %v1986
      %v1988 = vpop.f32.mrf.mxu0
      %1989 = vmatprep.mubr.bf16.mxu0 0
      %1990 = vmatmul.mubr.bf16.gmra.mxu0 %v1901
      %v1991 = vpop.f32.mrf.mxu0
      %v1992 = vadd.f32 0.0, %v1991
      %v1993 = vpop.f32.mrf.mxu0
      %v1994 = vpop.f32.mrf.mxu0
      %v1995 = vadd.f32 0.0, %v1994
      %v1996 = vpop.f32.mrf.mxu0
      %1997 = vmatprep.mubr.bf16.mxu0 0
      %1998 = vmatmul.mubr.bf16.gmra.mxu0 %v1903
      %v1999 = vpop.f32.mrf.mxu0
      %v2000 = vadd.f32 0.0, %v1999
      %v2001 = vpop.f32.mrf.mxu0
      %v2002 = vpop.f32.mrf.mxu0
      %v2003 = vadd.f32 0.0, %v2002
      %v2004 = vpop.f32.mrf.mxu0
      %2005 = vmatprep.mubr.bf16.mxu0 0
      %2006 = vmatmul.mubr.bf16.gmra.mxu0 %v1905
      %v2007 = vpop.f32.mrf.mxu0
      %v2008 = vadd.f32 0.0, %v2007
      %v2009 = vpop.f32.mrf.mxu0
      %v2010 = vpop.f32.mrf.mxu0
      %v2011 = vadd.f32 0.0, %v2010
      %v2012 = vpop.f32.mrf.mxu0
      %2013 = vmatprep.mubr.bf16.mxu0 0
      %2014 = vmatmul.mubr.bf16.gmra.mxu0 %v1907
      %v2015 = vpop.f32.mrf.mxu0
      %v2016 = vadd.f32 0.0, %v2015
      %v2017 = vpop.f32.mrf.mxu0
      %v2018 = vpop.f32.mrf.mxu0
      %v2019 = vadd.f32 0.0, %v2018
      %v2020 = vpop.f32.mrf.mxu0
      %2021 = vmatprep.mubr.bf16.mxu0 0
      %2022 = vmatmul.mubr.bf16.gmra.mxu0 %v1909
      %v2023 = vpop.f32.mrf.mxu0
      %v2024 = vadd.f32 0.0, %v2023
      %v2025 = vpop.f32.mrf.mxu0
      %v2026 = vpop.f32.mrf.mxu0
      %v2027 = vadd.f32 0.0, %v2026
      %v2028 = vpop.f32.mrf.mxu0
      %2029 = vmatprep.mubr.bf16.mxu0 0
      %2030 = vmatmul.mubr.bf16.gmra.mxu0 %v1911
      %v2031 = vpop.f32.mrf.mxu0
      %v2032 = vadd.f32 0.0, %v2031
      %v2033 = vpop.f32.mrf.mxu0
      %v2034 = vpop.f32.mrf.mxu0
      %v2035 = vadd.f32 0.0, %v2034
      %v2036 = vpop.f32.mrf.mxu0
      %2037 = vmatprep.mubr.bf16.mxu0 0
      %2038 = vmatmul.mubr.bf16.gmra.mxu0 %v1913
      %v2039 = vpop.f32.mrf.mxu0
      %v2040 = vadd.f32 0.0, %v2039
      %v2041 = vpop.f32.mrf.mxu0
      %v2042 = vpop.f32.mrf.mxu0
      %v2043 = vadd.f32 0.0, %v2042
      %v2044 = vpop.f32.mrf.mxu0
      %2045 = vmatprep.mubr.bf16.mxu0 0
      %2046 = vmatmul.mubr.bf16.gmra.mxu0 %v1915
      %v2047 = vpop.f32.mrf.mxu0
      %v2048 = vadd.f32 0.0, %v2047
      %v2049 = vpop.f32.mrf.mxu0
      %v2050 = vpop.f32.mrf.mxu0
      %v2051 = vadd.f32 0.0, %v2050
      %v2052 = vpop.f32.mrf.mxu0
      %2053 = vmatprep.mubr.bf16.mxu0 0
      %2054 = vmatmul.mubr.bf16.gmra.mxu0 %v1917
      %v2055 = vpop.f32.mrf.mxu0
      %v2056 = vadd.f32 0.0, %v2055
      %v2057 = vpop.f32.mrf.mxu0
      %v2058 = vpop.f32.mrf.mxu0
      %v2059 = vadd.f32 0.0, %v2058
      %v2060 = vpop.f32.mrf.mxu0
      %2061 = vmatprep.mubr.bf16.mxu0 0
      %2062 = vmatmul.mubr.bf16.gmra.mxu0 %v1919
      %v2063 = vpop.f32.mrf.mxu0
      %v2064 = vadd.f32 0.0, %v2063
      %v2065 = vpop.f32.mrf.mxu0
      %v2066 = vpop.f32.mrf.mxu0
      %v2067 = vadd.f32 0.0, %v2066
      %v2068 = vpop.f32.mrf.mxu0
      %2069 = vmatprep.mubr.bf16.mxu0 0
      %2070 = vmatmul.mubr.bf16.gmra.mxu0 %v1921
      %v2071 = vpop.f32.mrf.mxu0
      %v2072 = vadd.f32 0.0, %v2071
      %v2073 = vpop.f32.mrf.mxu0
      %v2074 = vpop.f32.mrf.mxu0
      %v2075 = vadd.f32 0.0, %v2074
      %v2076 = vpop.f32.mrf.mxu0
      %2077 = vmatprep.mubr.bf16.mxu0 0
      %2078 = vmatmul.mubr.bf16.gmra.mxu0 %v1923
      %v2079 = vpop.f32.mrf.mxu0
      %v2080 = vadd.f32 0.0, %v2079
      %v2081 = vpop.f32.mrf.mxu0
      %v2082 = vpop.f32.mrf.mxu0
      %v2083 = vadd.f32 0.0, %v2082
      %v2084 = vpop.f32.mrf.mxu0
      %2085 = vdwg.mxu0
      %2102 = vrot.lane.b32.xlu0 %v694, 4
      %v2103 = vpop.permute.xlu0 %2102
      %2104 = vrot.lane.b32.xlu0 %v695, 4
      %v2105 = vpop.permute.xlu0 %2104
      %2106 = vrot.lane.b32.xlu0 %v696, 4
      %v2107 = vpop.permute.xlu0 %2106
      %2108 = vrot.lane.b32.xlu0 %v697, 4
      %v2109 = vpop.permute.xlu0 %2108
      %2110 = vrot.lane.b32.xlu0 %v698, 4
      %v2111 = vpop.permute.xlu0 %2110
      %2112 = vrot.lane.b32.xlu0 %v699, 4
      %v2113 = vpop.permute.xlu0 %2112
      %2114 = vrot.lane.b32.xlu0 %v700, 4
      %v2115 = vpop.permute.xlu0 %2114
      %2116 = vrot.lane.b32.xlu0 %v701, 4
      %v2117 = vpop.permute.xlu0 %2116
      %2118 = vrot.lane.b32.xlu0 %v702, 4
      %v2119 = vpop.permute.xlu0 %2118
      %2120 = vrot.lane.b32.xlu0 %v703, 4
      %v2121 = vpop.permute.xlu0 %2120
      %2122 = vrot.lane.b32.xlu0 %v704, 4
      %v2123 = vpop.permute.xlu0 %2122
      %2124 = vrot.lane.b32.xlu0 %v705, 4
      %v2125 = vpop.permute.xlu0 %2124
      %2126 = vrot.lane.b32.xlu0 %v706, 4
      %v2127 = vpop.permute.xlu0 %2126
      %2128 = vrot.lane.b32.xlu0 %v707, 4
      %v2129 = vpop.permute.xlu0 %2128
      %2130 = vrot.lane.b32.xlu0 %v708, 4
      %v2131 = vpop.permute.xlu0 %2130
      %2132 = vrot.lane.b32.xlu0 %v709, 4
      %v2133 = vpop.permute.xlu0 %2132
      %2150 = vrot.lane.b32.xlu0 %v597, 8
      %v2151 = vpop.permute.xlu0 %2150
      %2152 = vrot.lane.b32.xlu0 %v598, 8
      %v2153 = vpop.permute.xlu0 %2152
      %2154 = vrot.lane.b32.xlu0 %v599, 8
      %v2155 = vpop.permute.xlu0 %2154
      %2156 = vrot.lane.b32.xlu0 %v600, 8
      %v2157 = vpop.permute.xlu0 %2156
      %2158 = vrot.lane.b32.xlu0 %v601, 8
      %v2159 = vpop.permute.xlu0 %2158
      %2160 = vrot.lane.b32.xlu0 %v602, 8
      %v2161 = vpop.permute.xlu0 %2160
      %2162 = vrot.lane.b32.xlu0 %v603, 8
      %v2163 = vpop.permute.xlu0 %2162
      %2164 = vrot.lane.b32.xlu0 %v604, 8
      %v2165 = vpop.permute.xlu0 %2164
      %2166 = vrot.lane.b32.xlu0 %v605, 8
      %v2167 = vpop.permute.xlu0 %2166
      %2168 = vrot.lane.b32.xlu0 %v606, 8
      %v2169 = vpop.permute.xlu0 %2168
      %2170 = vrot.lane.b32.xlu0 %v607, 8
      %v2171 = vpop.permute.xlu0 %2170
      %2172 = vrot.lane.b32.xlu0 %v608, 8
      %v2173 = vpop.permute.xlu0 %2172
      %2174 = vrot.lane.b32.xlu0 %v609, 8
      %v2175 = vpop.permute.xlu0 %2174
      %2176 = vrot.lane.b32.xlu0 %v610, 8
      %v2177 = vpop.permute.xlu0 %2176
      %2178 = vrot.lane.b32.xlu0 %v611, 8
      %v2179 = vpop.permute.xlu0 %2178
      %2180 = vrot.lane.b32.xlu0 %v612, 8
      %v2181 = vpop.permute.xlu0 %2180
      %2182 = vrot.lane.b32.xlu0 %v549, 12
      %v2183 = vpop.permute.xlu0 %2182
      %2184 = vrot.lane.b32.xlu0 %v550, 12
      %v2185 = vpop.permute.xlu0 %2184
      %2186 = vrot.lane.b32.xlu0 %v551, 12
      %v2187 = vpop.permute.xlu0 %2186
      %2188 = vrot.lane.b32.xlu0 %v552, 12
      %v2189 = vpop.permute.xlu0 %2188
      %2190 = vrot.lane.b32.xlu0 %v553, 12
      %v2191 = vpop.permute.xlu0 %2190
      %2192 = vrot.lane.b32.xlu0 %v554, 12
      %v2193 = vpop.permute.xlu0 %2192
      %2194 = vrot.lane.b32.xlu0 %v555, 12
      %v2195 = vpop.permute.xlu0 %2194
      %2196 = vrot.lane.b32.xlu0 %v556, 12
      %v2197 = vpop.permute.xlu0 %2196
      %2198 = vrot.lane.b32.xlu0 %v557, 12
      %v2199 = vpop.permute.xlu0 %2198
      %2200 = vrot.lane.b32.xlu0 %v558, 12
      %v2201 = vpop.permute.xlu0 %2200
      %2202 = vrot.lane.b32.xlu0 %v559, 12
      %v2203 = vpop.permute.xlu0 %2202
      %2204 = vrot.lane.b32.xlu0 %v560, 12
      %v2205 = vpop.permute.xlu0 %2204
      %2206 = vrot.lane.b32.xlu0 %v561, 12
      %v2207 = vpop.permute.xlu0 %2206
      %2208 = vrot.lane.b32.xlu0 %v562, 12
      %v2209 = vpop.permute.xlu0 %2208
      %2210 = vrot.lane.b32.xlu0 %v563, 12
      %v2211 = vpop.permute.xlu0 %2210
      %2212 = vrot.lane.b32.xlu0 %v564, 12
      %v2213 = vpop.permute.xlu0 %2212
      %v2216 = vsel %vm172, %v742, %v2103
      %v2219 = vsel %vm172, %v743, %v2105
      %v2222 = vsel %vm172, %v744, %v2107
      %v2225 = vsel %vm172, %v745, %v2109
      %v2228 = vsel %vm172, %v746, %v2111
      %v2231 = vsel %vm172, %v747, %v2113
      %v2234 = vsel %vm172, %v748, %v2115
      %v2237 = vsel %vm172, %v749, %v2117
      %v2240 = vsel %vm172, %v750, %v2119
      %v2243 = vsel %vm172, %v751, %v2121
      %v2246 = vsel %vm172, %v752, %v2123
      %v2249 = vsel %vm172, %v753, %v2125
      %v2252 = vsel %vm172, %v754, %v2127
      %v2255 = vsel %vm172, %v755, %v2129
      %v2258 = vsel %vm172, %v756, %v2131
      %v2261 = vsel %vm172, %v757, %v2133
      %v2263 = vsel %vm950, %v2216, %v2151
      %v2265 = vsel %vm950, %v2219, %v2153
      %v2267 = vsel %vm950, %v2222, %v2155
      %v2269 = vsel %vm950, %v2225, %v2157
      %v2271 = vsel %vm950, %v2228, %v2159
      %v2273 = vsel %vm950, %v2231, %v2161
      %v2275 = vsel %vm950, %v2234, %v2163
      %v2277 = vsel %vm950, %v2237, %v2165
      %v2279 = vsel %vm950, %v2240, %v2167
      %v2281 = vsel %vm950, %v2243, %v2169
      %v2283 = vsel %vm950, %v2246, %v2171
      %v2285 = vsel %vm950, %v2249, %v2173
      %v2287 = vsel %vm950, %v2252, %v2175
      %v2289 = vsel %vm950, %v2255, %v2177
      %v2291 = vsel %vm950, %v2258, %v2179
      %v2293 = vsel %vm950, %v2261, %v2181
      %v2295 = vsel %vm983, %v2263, %v2183
      %v2297 = vsel %vm983, %v2265, %v2185
      %v2299 = vsel %vm983, %v2267, %v2187
      %v2301 = vsel %vm983, %v2269, %v2189
      %v2303 = vsel %vm983, %v2271, %v2191
      %v2305 = vsel %vm983, %v2273, %v2193
      %v2307 = vsel %vm983, %v2275, %v2195
      %v2309 = vsel %vm983, %v2277, %v2197
      %v2311 = vsel %vm983, %v2279, %v2199
      %v2313 = vsel %vm983, %v2281, %v2201
      %v2315 = vsel %vm983, %v2283, %v2203
      %v2317 = vsel %vm983, %v2285, %v2205
      %v2319 = vsel %vm983, %v2287, %v2207
      %v2321 = vsel %vm983, %v2289, %v2209
      %v2323 = vsel %vm983, %v2291, %v2211
      %v2325 = vsel %vm983, %v2293, %v2213
      %s2326 = scalar_lea.vmem %s1, 24
      %v2327 = vld [vmem:[%s2326] sm:$0xf]
      %v2328 = vld [vmem:[%s2326 + $0x4] sm:$0xf]
      %v2331 = vunpack.c.l.b16 %v2327
      %v2332 = vunpack.c.l.b16 %v2328
      %v2333 = vpack.c.b16 %v2332, %v2331
      %v2335 = vsel %vm1024, %v2295, 0
      %v2337 = vsel %vm1024, %v2297, 0
      %v2339 = vsel %vm1024, %v2299, 0
      %v2341 = vsel %vm1024, %v2301, 0
      %v2343 = vsel %vm1024, %v2303, 0
      %v2345 = vsel %vm1024, %v2305, 0
      %v2347 = vsel %vm1024, %v2307, 0
      %v2349 = vsel %vm1024, %v2309, 0
      %v2351 = vsel %vm1024, %v2311, 0
      %v2353 = vsel %vm1024, %v2313, 0
      %v2355 = vsel %vm1024, %v2315, 0
      %v2357 = vsel %vm1024, %v2317, 0
      %v2359 = vsel %vm1024, %v2319, 0
      %v2361 = vsel %vm1024, %v2321, 0
      %v2363 = vsel %vm1024, %v2323, 0
      %v2365 = vsel %vm1024, %v2325, 0
      %2367 = vmatprep.subr.bf16.mxu0 0
      %2368 = vmatpush1.bf16.msra.mxu0 0
      %2369 = vmatprep.subr.bf16.mxu0 0
      %2370 = vmatpush1.bf16.msra.mxu0 0
      %2371 = vmatprep.subr.bf16.mxu0 0
      %2372 = vmatpush1.bf16.msra.mxu0 0
      %2373 = vmatprep.subr.bf16.mxu0 0
      %2374 = vmatpush1.bf16.msra.mxu0 0
      %2375 = vmatprep.subr.bf16.mxu0 0
      %2376 = vmatpush1.bf16.msra.mxu0 0
      %2377 = vmatprep.subr.bf16.mxu0 0
      %2378 = vmatpush1.bf16.msra.mxu0 0
      %2379 = vmatprep.subr.bf16.mxu0 0
      %2380 = vmatpush1.bf16.msra.mxu0 0
      %2381 = vmatprep.subr.bf16.mxu0 0
      %2382 = vmatpush1.bf16.msra.mxu0 %v2333
      %2383 = vmatprep.subr.bf16.mxu0 0
      %2384 = vmatpush2.bf16.msra.mxu0 0
      %2385 = vmatprep.subr.bf16.mxu0 0
      %2386 = vmatpush2.bf16.msra.mxu0 0
      %2387 = vmatprep.subr.bf16.mxu0 0
      %2388 = vmatpush2.bf16.msra.mxu0 0
      %2389 = vmatprep.subr.bf16.mxu0 0
      %2390 = vmatpush2.bf16.msra.mxu0 0
      %2391 = vmatprep.subr.bf16.mxu0 0
      %2392 = vmatpush2.bf16.msra.mxu0 0
      %2393 = vmatprep.subr.bf16.mxu0 0
      %2394 = vmatpush2.bf16.msra.mxu0 0
      %2395 = vmatprep.subr.bf16.mxu0 0
      %2396 = vmatpush2.bf16.msra.mxu0 0
      %2397 = vmatprep.subr.bf16.mxu0 0
      %2398 = vmatpush2.bf16.msra.mxu0 0
      %2399 = vmatprep.mubr.bf16.mxu0 0
      %2400 = vmatmul.mubr.bf16.gmra.mxu0 %v2335
      %v2401 = vpop.f32.mrf.mxu0
      %v2402 = vadd.f32 0.0, %v2401
      %v2403 = vpop.f32.mrf.mxu0
      %v2404 = vpop.f32.mrf.mxu0
      %v2405 = vadd.f32 0.0, %v2404
      %v2406 = vpop.f32.mrf.mxu0
      %2407 = vmatprep.mubr.bf16.mxu0 0
      %2408 = vmatmul.mubr.bf16.gmra.mxu0 %v2337
      %v2409 = vpop.f32.mrf.mxu0
      %v2410 = vadd.f32 0.0, %v2409
      %v2411 = vpop.f32.mrf.mxu0
      %v2412 = vpop.f32.mrf.mxu0
      %v2413 = vadd.f32 0.0, %v2412
      %v2414 = vpop.f32.mrf.mxu0
      %2415 = vmatprep.mubr.bf16.mxu0 0
      %2416 = vmatmul.mubr.bf16.gmra.mxu0 %v2339
      %v2417 = vpop.f32.mrf.mxu0
      %v2418 = vadd.f32 0.0, %v2417
      %v2419 = vpop.f32.mrf.mxu0
      %v2420 = vpop.f32.mrf.mxu0
      %v2421 = vadd.f32 0.0, %v2420
      %v2422 = vpop.f32.mrf.mxu0
      %2423 = vmatprep.mubr.bf16.mxu0 0
      %2424 = vmatmul.mubr.bf16.gmra.mxu0 %v2341
      %v2425 = vpop.f32.mrf.mxu0
      %v2426 = vadd.f32 0.0, %v2425
      %v2427 = vpop.f32.mrf.mxu0
      %v2428 = vpop.f32.mrf.mxu0
      %v2429 = vadd.f32 0.0, %v2428
      %v2430 = vpop.f32.mrf.mxu0
      %2431 = vmatprep.mubr.bf16.mxu0 0
      %2432 = vmatmul.mubr.bf16.gmra.mxu0 %v2343
      %v2433 = vpop.f32.mrf.mxu0
      %v2434 = vadd.f32 0.0, %v2433
      %v2435 = vpop.f32.mrf.mxu0
      %v2436 = vpop.f32.mrf.mxu0
      %v2437 = vadd.f32 0.0, %v2436
      %v2438 = vpop.f32.mrf.mxu0
      %2439 = vmatprep.mubr.bf16.mxu0 0
      %2440 = vmatmul.mubr.bf16.gmra.mxu0 %v2345
      %v2441 = vpop.f32.mrf.mxu0
      %v2442 = vadd.f32 0.0, %v2441
      %v2443 = vpop.f32.mrf.mxu0
      %v2444 = vpop.f32.mrf.mxu0
      %v2445 = vadd.f32 0.0, %v2444
      %v2446 = vpop.f32.mrf.mxu0
      %2447 = vmatprep.mubr.bf16.mxu0 0
      %2448 = vmatmul.mubr.bf16.gmra.mxu0 %v2347
      %v2449 = vpop.f32.mrf.mxu0
      %v2450 = vadd.f32 0.0, %v2449
      %v2451 = vpop.f32.mrf.mxu0
      %v2452 = vpop.f32.mrf.mxu0
      %v2453 = vadd.f32 0.0, %v2452
      %v2454 = vpop.f32.mrf.mxu0
      %2455 = vmatprep.mubr.bf16.mxu0 0
      %2456 = vmatmul.mubr.bf16.gmra.mxu0 %v2349
      %v2457 = vpop.f32.mrf.mxu0
      %v2458 = vadd.f32 0.0, %v2457
      %v2459 = vpop.f32.mrf.mxu0
      %v2460 = vpop.f32.mrf.mxu0
      %v2461 = vadd.f32 0.0, %v2460
      %v2462 = vpop.f32.mrf.mxu0
      %2463 = vmatprep.mubr.bf16.mxu0 0
      %2464 = vmatmul.mubr.bf16.gmra.mxu0 %v2351
      %v2465 = vpop.f32.mrf.mxu0
      %v2466 = vadd.f32 0.0, %v2465
      %v2467 = vpop.f32.mrf.mxu0
      %v2468 = vpop.f32.mrf.mxu0
      %v2469 = vadd.f32 0.0, %v2468
      %v2470 = vpop.f32.mrf.mxu0
      %2471 = vmatprep.mubr.bf16.mxu0 0
      %2472 = vmatmul.mubr.bf16.gmra.mxu0 %v2353
      %v2473 = vpop.f32.mrf.mxu0
      %v2474 = vadd.f32 0.0, %v2473
      %v2475 = vpop.f32.mrf.mxu0
      %v2476 = vpop.f32.mrf.mxu0
      %v2477 = vadd.f32 0.0, %v2476
      %v2478 = vpop.f32.mrf.mxu0
      %2479 = vmatprep.mubr.bf16.mxu0 0
      %2480 = vmatmul.mubr.bf16.gmra.mxu0 %v2355
      %v2481 = vpop.f32.mrf.mxu0
      %v2482 = vadd.f32 0.0, %v2481
      %v2483 = vpop.f32.mrf.mxu0
      %v2484 = vpop.f32.mrf.mxu0
      %v2485 = vadd.f32 0.0, %v2484
      %v2486 = vpop.f32.mrf.mxu0
      %2487 = vmatprep.mubr.bf16.mxu0 0
      %2488 = vmatmul.mubr.bf16.gmra.mxu0 %v2357
      %v2489 = vpop.f32.mrf.mxu0
      %v2490 = vadd.f32 0.0, %v2489
      %v2491 = vpop.f32.mrf.mxu0
      %v2492 = vpop.f32.mrf.mxu0
      %v2493 = vadd.f32 0.0, %v2492
      %v2494 = vpop.f32.mrf.mxu0
      %2495 = vmatprep.mubr.bf16.mxu0 0
      %2496 = vmatmul.mubr.bf16.gmra.mxu0 %v2359
      %v2497 = vpop.f32.mrf.mxu0
      %v2498 = vadd.f32 0.0, %v2497
      %v2499 = vpop.f32.mrf.mxu0
      %v2500 = vpop.f32.mrf.mxu0
      %v2501 = vadd.f32 0.0, %v2500
      %v2502 = vpop.f32.mrf.mxu0
      %2503 = vmatprep.mubr.bf16.mxu0 0
      %2504 = vmatmul.mubr.bf16.gmra.mxu0 %v2361
      %v2505 = vpop.f32.mrf.mxu0
      %v2506 = vadd.f32 0.0, %v2505
      %v2507 = vpop.f32.mrf.mxu0
      %v2508 = vpop.f32.mrf.mxu0
      %v2509 = vadd.f32 0.0, %v2508
      %v2510 = vpop.f32.mrf.mxu0
      %2511 = vmatprep.mubr.bf16.mxu0 0
      %2512 = vmatmul.mubr.bf16.gmra.mxu0 %v2363
      %v2513 = vpop.f32.mrf.mxu0
      %v2514 = vadd.f32 0.0, %v2513
      %v2515 = vpop.f32.mrf.mxu0
      %v2516 = vpop.f32.mrf.mxu0
      %v2517 = vadd.f32 0.0, %v2516
      %v2518 = vpop.f32.mrf.mxu0
      %2519 = vmatprep.mubr.bf16.mxu0 0
      %2520 = vmatmul.mubr.bf16.gmra.mxu0 %v2365
      %v2521 = vpop.f32.mrf.mxu0
      %v2522 = vadd.f32 0.0, %v2521
      %v2523 = vpop.f32.mrf.mxu0
      %v2524 = vpop.f32.mrf.mxu0
      %v2525 = vadd.f32 0.0, %v2524
      %v2526 = vpop.f32.mrf.mxu0
      %2527 = vdwg.mxu0
      %2560 = vrot.lane.b32.xlu0 %v1534, 4
      %v2561 = vpop.permute.xlu0 %2560
      %2562 = vrot.lane.b32.xlu0 %v1537, 4
      %v2563 = vpop.permute.xlu0 %2562
      %2564 = vrot.lane.b32.xlu0 %v1542, 4
      %v2565 = vpop.permute.xlu0 %2564
      %2566 = vrot.lane.b32.xlu0 %v1545, 4
      %v2567 = vpop.permute.xlu0 %2566
      %2568 = vrot.lane.b32.xlu0 %v1550, 4
      %v2569 = vpop.permute.xlu0 %2568
      %2570 = vrot.lane.b32.xlu0 %v1553, 4
      %v2571 = vpop.permute.xlu0 %2570
      %2572 = vrot.lane.b32.xlu0 %v1558, 4
      %v2573 = vpop.permute.xlu0 %2572
      %2574 = vrot.lane.b32.xlu0 %v1561, 4
      %v2575 = vpop.permute.xlu0 %2574
      %2576 = vrot.lane.b32.xlu0 %v1566, 4
      %v2577 = vpop.permute.xlu0 %2576
      %2578 = vrot.lane.b32.xlu0 %v1569, 4
      %v2579 = vpop.permute.xlu0 %2578
      %2580 = vrot.lane.b32.xlu0 %v1574, 4
      %v2581 = vpop.permute.xlu0 %2580
      %2582 = vrot.lane.b32.xlu0 %v1577, 4
      %v2583 = vpop.permute.xlu0 %2582
      %2584 = vrot.lane.b32.xlu0 %v1582, 4
      %v2585 = vpop.permute.xlu0 %2584
      %2586 = vrot.lane.b32.xlu0 %v1585, 4
      %v2587 = vpop.permute.xlu0 %2586
      %2588 = vrot.lane.b32.xlu0 %v1590, 4
      %v2589 = vpop.permute.xlu0 %2588
      %2590 = vrot.lane.b32.xlu0 %v1593, 4
      %v2591 = vpop.permute.xlu0 %2590
      %2592 = vrot.lane.b32.xlu0 %v1598, 4
      %v2593 = vpop.permute.xlu0 %2592
      %2594 = vrot.lane.b32.xlu0 %v1601, 4
      %v2595 = vpop.permute.xlu0 %2594
      %2596 = vrot.lane.b32.xlu0 %v1606, 4
      %v2597 = vpop.permute.xlu0 %2596
      %2598 = vrot.lane.b32.xlu0 %v1609, 4
      %v2599 = vpop.permute.xlu0 %2598
      %2600 = vrot.lane.b32.xlu0 %v1614, 4
      %v2601 = vpop.permute.xlu0 %2600
      %2602 = vrot.lane.b32.xlu0 %v1617, 4
      %v2603 = vpop.permute.xlu0 %2602
      %2604 = vrot.lane.b32.xlu0 %v1622, 4
      %v2605 = vpop.permute.xlu0 %2604
      %2606 = vrot.lane.b32.xlu0 %v1625, 4
      %v2607 = vpop.permute.xlu0 %2606
      %2608 = vrot.lane.b32.xlu0 %v1630, 4
      %v2609 = vpop.permute.xlu0 %2608
      %2610 = vrot.lane.b32.xlu0 %v1633, 4
      %v2611 = vpop.permute.xlu0 %2610
      %2612 = vrot.lane.b32.xlu0 %v1638, 4
      %v2613 = vpop.permute.xlu0 %2612
      %2614 = vrot.lane.b32.xlu0 %v1641, 4
      %v2615 = vpop.permute.xlu0 %2614
      %2616 = vrot.lane.b32.xlu0 %v1646, 4
      %v2617 = vpop.permute.xlu0 %2616
      %2618 = vrot.lane.b32.xlu0 %v1649, 4
      %v2619 = vpop.permute.xlu0 %2618
      %2620 = vrot.lane.b32.xlu0 %v1654, 4
      %v2621 = vpop.permute.xlu0 %2620
      %2622 = vrot.lane.b32.xlu0 %v1657, 4
      %v2623 = vpop.permute.xlu0 %2622
      %2688 = vrot.lane.b32.xlu0 %v1960, 8
      %v2689 = vpop.permute.xlu0 %2688
      %2690 = vrot.lane.b32.xlu0 %v1963, 8
      %v2691 = vpop.permute.xlu0 %2690
      %2692 = vrot.lane.b32.xlu0 %v1968, 8
      %v2693 = vpop.permute.xlu0 %2692
      %2694 = vrot.lane.b32.xlu0 %v1971, 8
      %v2695 = vpop.permute.xlu0 %2694
      %2696 = vrot.lane.b32.xlu0 %v1976, 8
      %v2697 = vpop.permute.xlu0 %2696
      %2698 = vrot.lane.b32.xlu0 %v1979, 8
      %v2699 = vpop.permute.xlu0 %2698
      %2700 = vrot.lane.b32.xlu0 %v1984, 8
      %v2701 = vpop.permute.xlu0 %2700
      %2702 = vrot.lane.b32.xlu0 %v1987, 8
      %v2703 = vpop.permute.xlu0 %2702
      %2704 = vrot.lane.b32.xlu0 %v1992, 8
      %v2705 = vpop.permute.xlu0 %2704
      %2706 = vrot.lane.b32.xlu0 %v1995, 8
      %v2707 = vpop.permute.xlu0 %2706
      %2708 = vrot.lane.b32.xlu0 %v2000, 8
      %v2709 = vpop.permute.xlu0 %2708
      %2710 = vrot.lane.b32.xlu0 %v2003, 8
      %v2711 = vpop.permute.xlu0 %2710
      %2712 = vrot.lane.b32.xlu0 %v2008, 8
      %v2713 = vpop.permute.xlu0 %2712
      %2714 = vrot.lane.b32.xlu0 %v2011, 8
      %v2715 = vpop.permute.xlu0 %2714
      %2716 = vrot.lane.b32.xlu0 %v2016, 8
      %v2717 = vpop.permute.xlu0 %2716
      %2718 = vrot.lane.b32.xlu0 %v2019, 8
      %v2719 = vpop.permute.xlu0 %2718
      %2720 = vrot.lane.b32.xlu0 %v2024, 8
      %v2721 = vpop.permute.xlu0 %2720
      %2722 = vrot.lane.b32.xlu0 %v2027, 8
      %v2723 = vpop.permute.xlu0 %2722
      %2724 = vrot.lane.b32.xlu0 %v2032, 8
      %v2725 = vpop.permute.xlu0 %2724
      %2726 = vrot.lane.b32.xlu0 %v2035, 8
      %v2727 = vpop.permute.xlu0 %2726
      %2728 = vrot.lane.b32.xlu0 %v2040, 8
      %v2729 = vpop.permute.xlu0 %2728
      %2730 = vrot.lane.b32.xlu0 %v2043, 8
      %v2731 = vpop.permute.xlu0 %2730
      %2732 = vrot.lane.b32.xlu0 %v2048, 8
      %v2733 = vpop.permute.xlu0 %2732
      %2734 = vrot.lane.b32.xlu0 %v2051, 8
      %v2735 = vpop.permute.xlu0 %2734
      %2736 = vrot.lane.b32.xlu0 %v2056, 8
      %v2737 = vpop.permute.xlu0 %2736
      %2738 = vrot.lane.b32.xlu0 %v2059, 8
      %v2739 = vpop.permute.xlu0 %2738
      %2740 = vrot.lane.b32.xlu0 %v2064, 8
      %v2741 = vpop.permute.xlu0 %2740
      %2742 = vrot.lane.b32.xlu0 %v2067, 8
      %v2743 = vpop.permute.xlu0 %2742
      %2744 = vrot.lane.b32.xlu0 %v2072, 8
      %v2745 = vpop.permute.xlu0 %2744
      %2746 = vrot.lane.b32.xlu0 %v2075, 8
      %v2747 = vpop.permute.xlu0 %2746
      %2748 = vrot.lane.b32.xlu0 %v2080, 8
      %v2749 = vpop.permute.xlu0 %2748
      %2750 = vrot.lane.b32.xlu0 %v2083, 8
      %v2751 = vpop.permute.xlu0 %2750
      %2816 = vrot.lane.b32.xlu0 %v2402, 12
      %v2817 = vpop.permute.xlu0 %2816
      %2818 = vrot.lane.b32.xlu0 %v2405, 12
      %v2819 = vpop.permute.xlu0 %2818
      %2820 = vrot.lane.b32.xlu0 %v2410, 12
      %v2821 = vpop.permute.xlu0 %2820
      %2822 = vrot.lane.b32.xlu0 %v2413, 12
      %v2823 = vpop.permute.xlu0 %2822
      %2824 = vrot.lane.b32.xlu0 %v2418, 12
      %v2825 = vpop.permute.xlu0 %2824
      %2826 = vrot.lane.b32.xlu0 %v2421, 12
      %v2827 = vpop.permute.xlu0 %2826
      %2828 = vrot.lane.b32.xlu0 %v2426, 12
      %v2829 = vpop.permute.xlu0 %2828
      %2830 = vrot.lane.b32.xlu0 %v2429, 12
      %v2831 = vpop.permute.xlu0 %2830
      %2832 = vrot.lane.b32.xlu0 %v2434, 12
      %v2833 = vpop.permute.xlu0 %2832
      %2834 = vrot.lane.b32.xlu0 %v2437, 12
      %v2835 = vpop.permute.xlu0 %2834
      %2836 = vrot.lane.b32.xlu0 %v2442, 12
      %v2837 = vpop.permute.xlu0 %2836
      %2838 = vrot.lane.b32.xlu0 %v2445, 12
      %v2839 = vpop.permute.xlu0 %2838
      %2840 = vrot.lane.b32.xlu0 %v2450, 12
      %v2841 = vpop.permute.xlu0 %2840
      %2842 = vrot.lane.b32.xlu0 %v2453, 12
      %v2843 = vpop.permute.xlu0 %2842
      %2844 = vrot.lane.b32.xlu0 %v2458, 12
      %v2845 = vpop.permute.xlu0 %2844
      %2846 = vrot.lane.b32.xlu0 %v2461, 12
      %v2847 = vpop.permute.xlu0 %2846
      %2848 = vrot.lane.b32.xlu0 %v2466, 12
      %v2849 = vpop.permute.xlu0 %2848
      %2850 = vrot.lane.b32.xlu0 %v2469, 12
      %v2851 = vpop.permute.xlu0 %2850
      %2852 = vrot.lane.b32.xlu0 %v2474, 12
      %v2853 = vpop.permute.xlu0 %2852
      %2854 = vrot.lane.b32.xlu0 %v2477, 12
      %v2855 = vpop.permute.xlu0 %2854
      %2856 = vrot.lane.b32.xlu0 %v2482, 12
      %v2857 = vpop.permute.xlu0 %2856
      %2858 = vrot.lane.b32.xlu0 %v2485, 12
      %v2859 = vpop.permute.xlu0 %2858
      %2860 = vrot.lane.b32.xlu0 %v2490, 12
      %v2861 = vpop.permute.xlu0 %2860
      %2862 = vrot.lane.b32.xlu0 %v2493, 12
      %v2863 = vpop.permute.xlu0 %2862
      %2864 = vrot.lane.b32.xlu0 %v2498, 12
      %v2865 = vpop.permute.xlu0 %2864
      %2866 = vrot.lane.b32.xlu0 %v2501, 12
      %v2867 = vpop.permute.xlu0 %2866
      %2868 = vrot.lane.b32.xlu0 %v2506, 12
      %v2869 = vpop.permute.xlu0 %2868
      %2870 = vrot.lane.b32.xlu0 %v2509, 12
      %v2871 = vpop.permute.xlu0 %2870
      %2872 = vrot.lane.b32.xlu0 %v2514, 12
      %v2873 = vpop.permute.xlu0 %2872
      %2874 = vrot.lane.b32.xlu0 %v2517, 12
      %v2875 = vpop.permute.xlu0 %2874
      %2876 = vrot.lane.b32.xlu0 %v2522, 12
      %v2877 = vpop.permute.xlu0 %2876
      %2878 = vrot.lane.b32.xlu0 %v2525, 12
      %v2879 = vpop.permute.xlu0 %2878
      %v2912 = vsel %vm172, %v1092, %v2561
      %v2913 = vsel %vm172, %v1095, %v2563
      %v2914 = vsel %vm172, %v1100, %v2565
      %v2915 = vsel %vm172, %v1103, %v2567
      %v2916 = vsel %vm172, %v1108, %v2569
      %v2917 = vsel %vm172, %v1111, %v2571
      %v2918 = vsel %vm172, %v1116, %v2573
      %v2919 = vsel %vm172, %v1119, %v2575
      %v2920 = vsel %vm172, %v1124, %v2577
      %v2921 = vsel %vm172, %v1127, %v2579
      %v2922 = vsel %vm172, %v1132, %v2581
      %v2923 = vsel %vm172, %v1135, %v2583
      %v2924 = vsel %vm172, %v1140, %v2585
      %v2925 = vsel %vm172, %v1143, %v2587
      %v2926 = vsel %vm172, %v1148, %v2589
      %v2927 = vsel %vm172, %v1151, %v2591
      %v2928 = vsel %vm172, %v1156, %v2593
      %v2929 = vsel %vm172, %v1159, %v2595
      %v2930 = vsel %vm172, %v1164, %v2597
      %v2931 = vsel %vm172, %v1167, %v2599
      %v2932 = vsel %vm172, %v1172, %v2601
      %v2933 = vsel %vm172, %v1175, %v2603
      %v2934 = vsel %vm172, %v1180, %v2605
      %v2935 = vsel %vm172, %v1183, %v2607
      %v2936 = vsel %vm172, %v1188, %v2609
      %v2937 = vsel %vm172, %v1191, %v2611
      %v2938 = vsel %vm172, %v1196, %v2613
      %v2939 = vsel %vm172, %v1199, %v2615
      %v2940 = vsel %vm172, %v1204, %v2617
      %v2941 = vsel %vm172, %v1207, %v2619
      %v2942 = vsel %vm172, %v1212, %v2621
      %v2943 = vsel %vm172, %v1215, %v2623
      %v2944 = vsel %vm950, %v2912, %v2689
      %v2945 = vsel %vm950, %v2913, %v2691
      %v2946 = vsel %vm950, %v2914, %v2693
      %v2947 = vsel %vm950, %v2915, %v2695
      %v2948 = vsel %vm950, %v2916, %v2697
      %v2949 = vsel %vm950, %v2917, %v2699
      %v2950 = vsel %vm950, %v2918, %v2701
      %v2951 = vsel %vm950, %v2919, %v2703
      %v2952 = vsel %vm950, %v2920, %v2705
      %v2953 = vsel %vm950, %v2921, %v2707
      %v2954 = vsel %vm950, %v2922, %v2709
      %v2955 = vsel %vm950, %v2923, %v2711
      %v2956 = vsel %vm950, %v2924, %v2713
      %v2957 = vsel %vm950, %v2925, %v2715
      %v2958 = vsel %vm950, %v2926, %v2717
      %v2959 = vsel %vm950, %v2927, %v2719
      %v2960 = vsel %vm950, %v2928, %v2721
      %v2961 = vsel %vm950, %v2929, %v2723
      %v2962 = vsel %vm950, %v2930, %v2725
      %v2963 = vsel %vm950, %v2931, %v2727
      %v2964 = vsel %vm950, %v2932, %v2729
      %v2965 = vsel %vm950, %v2933, %v2731
      %v2966 = vsel %vm950, %v2934, %v2733
      %v2967 = vsel %vm950, %v2935, %v2735
      %v2968 = vsel %vm950, %v2936, %v2737
      %v2969 = vsel %vm950, %v2937, %v2739
      %v2970 = vsel %vm950, %v2938, %v2741
      %v2971 = vsel %vm950, %v2939, %v2743
      %v2972 = vsel %vm950, %v2940, %v2745
      %v2973 = vsel %vm950, %v2941, %v2747
      %v2974 = vsel %vm950, %v2942, %v2749
      %v2975 = vsel %vm950, %v2943, %v2751
      %v2976 = vsel %vm983, %v2944, %v2817
      %v2977 = vsel %vm983, %v2945, %v2819
      %v2978 = vsel %vm983, %v2946, %v2821
      %v2979 = vsel %vm983, %v2947, %v2823
      %v2980 = vsel %vm983, %v2948, %v2825
      %v2981 = vsel %vm983, %v2949, %v2827
      %v2982 = vsel %vm983, %v2950, %v2829
      %v2983 = vsel %vm983, %v2951, %v2831
      %v2984 = vsel %vm983, %v2952, %v2833
      %v2985 = vsel %vm983, %v2953, %v2835
      %v2986 = vsel %vm983, %v2954, %v2837
      %v2987 = vsel %vm983, %v2955, %v2839
      %v2988 = vsel %vm983, %v2956, %v2841
      %v2989 = vsel %vm983, %v2957, %v2843
      %v2990 = vsel %vm983, %v2958, %v2845
      %v2991 = vsel %vm983, %v2959, %v2847
      %v2992 = vsel %vm983, %v2960, %v2849
      %v2993 = vsel %vm983, %v2961, %v2851
      %v2994 = vsel %vm983, %v2962, %v2853
      %v2995 = vsel %vm983, %v2963, %v2855
      %v2996 = vsel %vm983, %v2964, %v2857
      %v2997 = vsel %vm983, %v2965, %v2859
      %v2998 = vsel %vm983, %v2966, %v2861
      %v2999 = vsel %vm983, %v2967, %v2863
      %v3000 = vsel %vm983, %v2968, %v2865
      %v3001 = vsel %vm983, %v2969, %v2867
      %v3002 = vsel %vm983, %v2970, %v2869
      %v3003 = vsel %vm983, %v2971, %v2871
      %v3004 = vsel %vm983, %v2972, %v2873
      %v3005 = vsel %vm983, %v2973, %v2875
      %v3006 = vsel %vm983, %v2974, %v2877
      %v3007 = vsel %vm983, %v2975, %v2879
      %v3008 = vld [vmem:[%s2] sm:$0x1]
      %v3010 = vlaneseq
      %v3011 = vshrl.u32 %v3010, 7
      %v3012 = vsub.s32 0, %v3011
      %v3013 = vrot.slane %v3008, %v3012
      %v3015 = vadd.f32 %v2976, %v3013
      %v3016 = vadd.f32 %v2977, %v3013
      %v3017 = vadd.f32 %v2978, %v3013
      %v3018 = vadd.f32 %v2979, %v3013
      %v3019 = vadd.f32 %v2980, %v3013
      %v3020 = vadd.f32 %v2981, %v3013
      %v3021 = vadd.f32 %v2982, %v3013
      %v3022 = vadd.f32 %v2983, %v3013
      %v3023 = vadd.f32 %v2984, %v3013
      %v3024 = vadd.f32 %v2985, %v3013
      %v3025 = vadd.f32 %v2986, %v3013
      %v3026 = vadd.f32 %v2987, %v3013
      %v3027 = vadd.f32 %v2988, %v3013
      %v3028 = vadd.f32 %v2989, %v3013
      %v3029 = vadd.f32 %v2990, %v3013
      %v3030 = vadd.f32 %v2991, %v3013
      %v3031 = vadd.f32 %v2992, %v3013
      %v3032 = vadd.f32 %v2993, %v3013
      %v3033 = vadd.f32 %v2994, %v3013
      %v3034 = vadd.f32 %v2995, %v3013
      %v3035 = vadd.f32 %v2996, %v3013
      %v3036 = vadd.f32 %v2997, %v3013
      %v3037 = vadd.f32 %v2998, %v3013
      %v3038 = vadd.f32 %v2999, %v3013
      %v3039 = vadd.f32 %v3000, %v3013
      %v3040 = vadd.f32 %v3001, %v3013
      %v3041 = vadd.f32 %v3002, %v3013
      %v3042 = vadd.f32 %v3003, %v3013
      %v3043 = vadd.f32 %v3004, %v3013
      %v3044 = vadd.f32 %v3005, %v3013
      %v3045 = vadd.f32 %v3006, %v3013
      %v3046 = vadd.f32 %v3007, %v3013
      %3047 = vst.msk [vmem:[%s170] sm:$0xff] %vm1024, %v3015
      %3048 = vst.msk [vmem:[%s170 + $0x8] sm:$0xff] %vm1024, %v3016
      %3049 = vst.msk [vmem:[%s170 + $0x10] sm:$0xff] %vm1024, %v3017
      %3050 = vst.msk [vmem:[%s170 + $0x18] sm:$0xff] %vm1024, %v3018
      %3051 = vst.msk [vmem:[%s170 + $0x20] sm:$0xff] %vm1024, %v3019
      %3052 = vst.msk [vmem:[%s170 + $0x28] sm:$0xff] %vm1024, %v3020
      %3053 = vst.msk [vmem:[%s170 + $0x30] sm:$0xff] %vm1024, %v3021
      %3054 = vst.msk [vmem:[%s170 + $0x38] sm:$0xff] %vm1024, %v3022
      %3055 = vst.msk [vmem:[%s170 + $0x40] sm:$0xff] %vm1024, %v3023
      %3056 = vst.msk [vmem:[%s170 + $0x48] sm:$0xff] %vm1024, %v3024
      %3057 = vst.msk [vmem:[%s170 + $0x50] sm:$0xff] %vm1024, %v3025
      %3058 = vst.msk [vmem:[%s170 + $0x58] sm:$0xff] %vm1024, %v3026
      %3059 = vst.msk [vmem:[%s170 + $0x60] sm:$0xff] %vm1024, %v3027
      %3060 = vst.msk [vmem:[%s170 + $0x68] sm:$0xff] %vm1024, %v3028
      %3061 = vst.msk [vmem:[%s170 + $0x70] sm:$0xff] %vm1024, %v3029
      %3062 = vst.msk [vmem:[%s170 + $0x78] sm:$0xff] %vm1024, %v3030
      %3063 = vst.msk [vmem:[%s170 + $0x80] sm:$0xff] %vm1024, %v3031
      %3064 = vst.msk [vmem:[%s170 + $0x88] sm:$0xff] %vm1024, %v3032
      %3065 = vst.msk [vmem:[%s170 + $0x90] sm:$0xff] %vm1024, %v3033
      %3066 = vst.msk [vmem:[%s170 + $0x98] sm:$0xff] %vm1024, %v3034
      %3067 = vst.msk [vmem:[%s170 + $0xa0] sm:$0xff] %vm1024, %v3035
      %3068 = vst.msk [vmem:[%s170 + $0xa8] sm:$0xff] %vm1024, %v3036
      %3069 = vst.msk [vmem:[%s170 + $0xb0] sm:$0xff] %vm1024, %v3037
      %3070 = vst.msk [vmem:[%s170 + $0xb8] sm:$0xff] %vm1024, %v3038
      %3071 = vst.msk [vmem:[%s170 + $0xc0] sm:$0xff] %vm1024, %v3039
      %3072 = vst.msk [vmem:[%s170 + $0xc8] sm:$0xff] %vm1024, %v3040
      %3073 = vst.msk [vmem:[%s170 + $0xd0] sm:$0xff] %vm1024, %v3041
      %3074 = vst.msk [vmem:[%s170 + $0xd8] sm:$0xff] %vm1024, %v3042
      %3075 = vst.msk [vmem:[%s170 + $0xe0] sm:$0xff] %vm1024, %v3043
      %3076 = vst.msk [vmem:[%s170 + $0xe8] sm:$0xff] %vm1024, %v3044
      %3077 = vst.msk [vmem:[%s170 + $0xf0] sm:$0xff] %vm1024, %v3045
      %3078 = vst.msk [vmem:[%s170 + $0xf8] sm:$0xff] %vm1024, %v3046
      %p3079 = scmp.lt.s32.totalorder %s14, 1
      %s3080 = scalar_select %p3079, %s14, 1
      %s3081 = smul.addr %s3080, 32
      %s3082 = smul.addr %s3081, 8
      %s3083 = scalar_lea.vmem %s3, %s3082
      // Predicated region
      $region33: #{tpu_custom_call.1} parent=31 // pred_check
        %p3084 = pneg %p100
      $region34: #{tpu_custom_call.1} parent=31 // pred_check_branch
        %3086 = sbr.rel (%p3084) target = $region36
      $region35: #{tpu_custom_call.1} parent=31 // pred_region
        _
      $region36: #{tpu_custom_call.1} parent=31 // pred_fallthru
        _
    $region32: #{tpu_custom_call.1} parent=5 // pred_fallthru
      _
    %p3087 = scmp.le.s32.totalorder 2, %s9
    // Predicated region
    $region37: #{tpu_custom_call.1} parent=5 // pred_check
      %p3088 = pneg %p3087
    $region38: #{tpu_custom_call.1} parent=5 // pred_check_branch
      %3090 = sbr.rel (%p3088) target = $region40
    $region39: #{tpu_custom_call.1} parent=5 // pred_region
      %s3091 = ssub.s32 %s9, 2
      // Predicated region
      $region41: #{tpu_custom_call.1} parent=39 // pred_check
        %p3092 = pneg %p106
      $region42: #{tpu_custom_call.1} parent=39 // pred_check_branch
        %3094 = sbr.rel (%p3092) target = $region44
      $region43: #{tpu_custom_call.1} parent=39 // pred_region
        %p3095 = scmp.lt.s32.totalorder %s15, 1
        %s3096 = scalar_select %p3095, %s15, 1
        %s3097 = smul.addr %s3096, 32
        %s3098 = smul.addr %s3097, 8
        %s3099 = scalar_lea.vmem %s3, %s3098
      $region44: #{tpu_custom_call.1} parent=39 // pred_fallthru
        _
    $region40: #{tpu_custom_call.1} parent=5 // pred_fallthru
      _
  $region6: #{tpu_custom_call.1} parent=0 // loop_footer
    %s13 = sadd.s32 1, %s9
  $region7: #{tpu_custom_call.1} parent=0 // loop_footer_branch
    %8 = sbr.rel target = $region3
  $region8: #{tpu_custom_call.1} parent=0 // loop_exit
    _

</llo_original>
